<compile_context>
chip_gen: v5e
topology: v5e:2x2
jax: 0.10.0
libtpu: 0.0.40
codegen_flags: <defaults>
</compile_context>

<pallas_src>
import functools

import jax
import jax.numpy as jnp
from jax.experimental import pallas as pl
from jax.experimental.pallas import tpu as pltpu


def _round_up(x, m):
    return ((x + m - 1) // m) * m


def _largest_divisor_tile(total, cap, quantum=128):
    """Largest multiple of `quantum` <= cap that divides `total` (total % quantum == 0)."""
    t = max(quantum, min(total, (cap // quantum) * quantum))
    while total % t:
        t -= quantum
    return t


def _vmem_capacity_bytes():
    try:
        return int(pltpu.get_tpu_info().vmem_capacity_bytes)
    except Exception:
        return 64 << 20          # conservative fallback = v7x per-TensorCore VMEM


# ---------------------------------------------------------------------------
# Pallas kernel 1: conv-as-matmul (bf16 -> f32 acc) + per-tile channel stats
#   grid = (M tiles [parallel], K tiles [arbitrary, last])
# ---------------------------------------------------------------------------
def conv_stats_kernel(p_ref, w_ref, y_ref, stats_ref, acc_ref):
    k = pl.program_id(1)

    @pl.when(k == 0)
    def _():
        acc_ref[...] = jnp.zeros_like(acc_ref)

    # (TM, tk)bf16 @ (tk, Cp)bf16 on the MXU with f32 accumulation.
    acc_ref[...] += jnp.dot(p_ref[...], w_ref[...],
                            preferred_element_type=jnp.float32)

    @pl.when(k == pl.num_programs(1) - 1)
    def _():
        acc = acc_ref[...]
        y_ref[...] = acc
        # Per-tile partial channel stats from the f32 accumulator, emitted as ONE full
        # lane-dense (8, Cp) store: row0 = sum, row1 = sum of squares, rows 2..7 = 0.
        s1 = jnp.sum(acc, axis=0, keepdims=True)
        s2 = jnp.sum(acc * acc, axis=0, keepdims=True)
        row = jax.lax.broadcasted_iota(jnp.int32, stats_ref.shape, 0)
        stats_ref[...] = jnp.where(row == 0, s1, jnp.where(row == 1, s2, 0.0))


# ---------------------------------------------------------------------------
# Pallas kernel 2: fused BatchNorm affine (batch stats) + ReLU
# ---------------------------------------------------------------------------
def bn_relu_kernel(y_ref, scale_ref, shift_ref, o_ref):
    o_ref[...] = jnp.maximum(y_ref[...] * scale_ref[...] + shift_ref[...], 0.0)


# ---------------------------------------------------------------------------
# Glue: im2col patch extraction (plain JAX; pure slicing / padding, bf16)
# ---------------------------------------------------------------------------
def extract_patches_ndhwc(x, ksize, stride, padding, dilation):
    """x: (N, D, H, W, C) -> patches (N, Do, Ho, Wo, kd*kh*kw*C)."""
    kd, kh, kw = ksize
    sd, sh, sw = stride
    pd, ph, pw = padding
    dd, dh, dw = dilation
    N, D, H, W, C = x.shape

    xp = jnp.pad(x, ((0, 0), (pd, pd), (ph, ph), (pw, pw), (0, 0)))
    Do = (D + 2 * pd - dd * (kd - 1) - 1) // sd + 1
    Ho = (H + 2 * ph - dh * (kh - 1) - 1) // sh + 1
    Wo = (W + 2 * pw - dw * (kw - 1) - 1) // sw + 1

    slabs = []
    for a in range(kd):
        for b in range(kh):
            for c in range(kw):
                slab = xp[:,
                          a * dd: a * dd + sd * (Do - 1) + 1: sd,
                          b * dh: b * dh + sh * (Ho - 1) + 1: sh,
                          c * dw: c * dw + sw * (Wo - 1) + 1: sw,
                          :]
                slabs.append(slab)
    # Patch feature ordering: (kd, kh, kw, C_in) -- matches weight flattening below.
    return jnp.concatenate(slabs, axis=-1), (Do, Ho, Wo)


# ---------------------------------------------------------------------------
# ConvModule forward
# ---------------------------------------------------------------------------
@functools.partial(jax.jit, static_argnames=("ksize", "stride", "padding", "dilation"))
def conv_module_forward(x_ncdhw, weight, gamma, beta,
                        ksize=(3, 3, 3), stride=(1, 1, 1),
                        padding=(1, 1, 1), dilation=(1, 1, 1),
                        eps=1e-5):
    """x_ncdhw: (N, C_in, D, H, W); weight: (C_out, C_in, kd, kh, kw)."""
    N, Cin, D, H, W = x_ncdhw.shape
    Cout = weight.shape[0]
    kd, kh, kw = ksize

    # NCDHW -> NDHWC (lane-friendly), cast to bf16 before im2col so the duplicated patch
    # array is materialized (and streamed) at half width.
    x = jnp.transpose(x_ncdhw, (0, 2, 3, 4, 1)).astype(jnp.bfloat16)
    patches, (Do, Ho, Wo) = extract_patches_ndhwc(x, ksize, stride, padding, dilation)

    M = N * Do * Ho * Wo
    K = kd * kh * kw * Cin
    patches = patches.reshape(M, K)

    # MXU-aligned / lane-dense padding.
    Kp = _round_up(K, 128)
    Cp = _round_up(Cout, 128)
    tk = _largest_divisor_tile(Kp, 512)                  # K tile (VMEM independent of Cin)

    # Row tile: 1024 when M allows (v5e/v6e roofline); shrink if it would blow the VMEM budget.
    TM = 1024 if M >= 1024 else _round_up(max(M, 8), 8)
    vmem_cap = _vmem_capacity_bytes()
    budget = int(0.70 * vmem_cap)

    def k1_footprint(tm):
        # double-buffered bf16 patch/weight tiles + double-buffered f32 outputs + f32 acc.
        return (2 * (tm * tk * 2 + tk * Cp * 2 + tm * Cp * 4 + 8 * Cp * 4)
                + tm * Cp * 4 + (2 << 20))

    while k1_footprint(TM) > budget and TM > 256:
        TM = max(256, _round_up(TM // 2, 8))

    num_m_tiles = -(-M // TM)
    Mp = num_m_tiles * TM
    num_k_tiles = Kp // tk

    # Single pad pass to the padded (Mp, Kp) patch matrix (padded rows/cols are zero, so
    # they contribute nothing to either the matmul or the batch statistics).
    patches = jnp.pad(patches, ((0, Mp - M), (0, Kp - K)))

    # Conv3d weight (Cout, Cin, kd, kh, kw) -> (kd, kh, kw, Cin, Cout) -> (Kp, Cp), bf16.
    w2d = jnp.transpose(weight, (2, 3, 4, 1, 0)).reshape(K, Cout).astype(jnp.bfloat16)
    w2d = jnp.pad(w2d, ((0, Kp - K), (0, Cp - Cout)))

    vmem_k1 = int(min(max(k1_footprint(TM), 16 << 20), budget))

    # --- Pallas kernel 1: conv matmul (K-axis accumulation) + per-tile channel stats ---
    y, stats = pl.pallas_call(
        conv_stats_kernel,
        out_shape=(
            jax.ShapeDtypeStruct((Mp, Cp), jnp.float32),
            jax.ShapeDtypeStruct((num_m_tiles * 8, Cp), jnp.float32),
        ),
        grid_spec=pltpu.PrefetchScalarGridSpec(
            num_scalar_prefetch=0,
            grid=(num_m_tiles, num_k_tiles),
            in_specs=[
                pl.BlockSpec((TM, tk), lambda i, k: (i, k)),
                pl.BlockSpec((tk, Cp), lambda i, k: (k, 0)),
            ],
            out_specs=[
                pl.BlockSpec((TM, Cp), lambda i, k: (i, 0)),
                pl.BlockSpec((8, Cp), lambda i, k: (i, 0)),   # per-tile partial sums
            ],
            scratch_shapes=[pltpu.VMEM((TM, Cp), jnp.float32)],
        ),
        compiler_params=pltpu.CompilerParams(
            dimension_semantics=("parallel", "arbitrary"),    # M parallel (megacore), K last
            vmem_limit_bytes=vmem_k1),
    )(patches, w2d)

    # --- BatchNorm3d (training mode) batch statistics over (N, D, H, W) per channel ---
    # Centered per-tile partials + group combine (numerically safer than global E[x^2]-mu^2).
    stats = stats.reshape(num_m_tiles, 8, Cp)
    tile_sum = stats[:, 0, :]                                 # (T, Cp)
    tile_ssq = stats[:, 1, :]                                 # (T, Cp)
    counts = jnp.minimum(TM, M - TM * jnp.arange(num_m_tiles))
    counts = counts.astype(jnp.float32)[:, None]              # (T, 1), padded rows are zero
    mean = jnp.sum(tile_sum, axis=0) / M                      # (Cp,)
    tile_mean = tile_sum / counts
    tile_m2 = tile_ssq - counts * tile_mean * tile_mean
    m2 = jnp.sum(tile_m2 + counts * (tile_mean - mean[None, :]) ** 2, axis=0)
    var = m2 / M                                              # biased variance (PyTorch norm)

    gamma_p = jnp.pad(gamma.astype(jnp.float32), (0, Cp - Cout))
    beta_p = jnp.pad(beta.astype(jnp.float32), (0, Cp - Cout))
    scale = (gamma_p * jax.lax.rsqrt(var + eps)).reshape(1, Cp)
    shift = (beta_p - mean * scale[0]).reshape(1, Cp)

    # --- Pallas kernel 2: fused BN affine + ReLU (larger tile, output aliased onto y) ---
    TM2 = TM
    for f in (8, 4, 2):
        if num_m_tiles % f == 0 and TM * f <= 2048:
            TM2 = TM * f
            break
    vmem_k2 = int(min(max(2 * (2 * TM2 * Cp * 4 + 2 * Cp * 4) + (2 << 20), 16 << 20), budget))

    out = pl.pallas_call(
        bn_relu_kernel,
        out_shape=jax.ShapeDtypeStruct((Mp, Cp), jnp.float32),
        grid_spec=pltpu.PrefetchScalarGridSpec(
            num_scalar_prefetch=0,
            grid=(Mp // TM2,),
            in_specs=[
                pl.BlockSpec((TM2, Cp), lambda i: (i, 0)),
                pl.BlockSpec((1, Cp), lambda i: (0, 0)),
                pl.BlockSpec((1, Cp), lambda i: (0, 0)),
            ],
            out_specs=pl.BlockSpec((TM2, Cp), lambda i: (i, 0)),
        ),
        compiler_params=pltpu.CompilerParams(
            dimension_semantics=("parallel",),
            vmem_limit_bytes=vmem_k2),
        input_output_aliases={0: 0},                           # reuse y's HBM buffer
    )(y, scale, shift)

    # Strip padding; (M, Cout) -> (N, Do, Ho, Wo, Cout) -> NCDHW (PyTorch output layout).
    out = out[:M, :Cout].reshape(N, Do, Ho, Wo, Cout)
    return jnp.transpose(out, (0, 4, 1, 2, 3))


# ---------------------------------------------------------------------------
# Deterministic parameter init (matches ConvModule.init_weights)
# ---------------------------------------------------------------------------
def init_params(key, in_channels, out_channels, ksize):
    kd, kh, kw = ksize
    # kaiming_normal_, mode='fan_out', nonlinearity='relu':
    #   fan_out = out_channels * kd*kh*kw, gain = sqrt(2), std = gain / sqrt(fan_out)
    fan_out = out_channels * kd * kh * kw
    std = (2.0 / fan_out) ** 0.5
    weight = jax.random.normal(
        key, (out_channels, in_channels, kd, kh, kw), dtype=jnp.float32) * std
    # constant_init(bn, 1, bias=0)
    gamma = jnp.ones((out_channels,), jnp.float32)
    beta = jnp.zeros((out_channels,), jnp.float32)
    return weight, gamma, beta


if __name__ == "__main__":
    # Small shapes: N=2, C_in=4, D=4, H=8, W=8; Conv3d(4 -> 8, k=3, stride=1, pad=1), bias=False.
    key = jax.random.PRNGKey(0)
    k_x, k_w = jax.random.split(key)

    N, Cin, D, H, W = 2, 4, 4, 8, 8
    Cout = 8
    ksize = (3, 3, 3)

    x = jax.random.normal(k_x, (N, Cin, D, H, W), dtype=jnp.float32)
    weight, gamma, beta = init_params(k_w, Cin, Cout, ksize)

    out = conv_module_forward(x, weight, gamma, beta,
                              ksize=ksize, stride=(1, 1, 1),
                              padding=(1, 1, 1), dilation=(1, 1, 1))
    out = jax.block_until_ready(out)

    assert out.shape == (N, Cout, D, H, W), out.shape
    assert bool(jnp.all(jnp.isfinite(out)))
    print("KERNEL_OK")
</pallas_src>

<mosaic_0001>
module attributes {stable_mosaic.version = 11 : i64} {
  func.func @conv_stats_kernel(%arg0: i32, %arg1: i32, %arg2: memref<512x128xbf16, #tpu.memory_space<vmem>>, %arg3: memref<128x128xbf16, #tpu.memory_space<vmem>>, %arg4: memref<512x128xf32, #tpu.memory_space<vmem>>, %arg5: memref<8x128xf32, #tpu.memory_space<vmem>>, %arg6: memref<512x128xf32, #tpu.memory_space<vmem>>) attributes {dimension_semantics = [#tpu.dimension_semantics<parallel>, #tpu.dimension_semantics<arbitrary>], iteration_bounds = array<i64: 1, 1>, scalar_prefetch = 0 : i64, scratch_operands = 1 : i64, tpu.core_type = #tpu.core_type<tc>, window_params = [{transform_indices = @transform_0, window_bounds = array<i64: 512, 128>}, {transform_indices = @transform_1, window_bounds = array<i64: 128, 128>}, {transform_indices = @transform_2, window_bounds = array<i64: 512, 128>}, {transform_indices = @transform_3, window_bounds = array<i64: 8, 128>}]} {
    %c0_i32 = arith.constant 0 : i32
    %0 = arith.cmpi eq, %arg1, %c0_i32 : i32
    %1 = arith.extui %0 : i1 to i32
    %c0_i32_0 = arith.constant 0 : i32
    %2 = arith.cmpi ne, %1, %c0_i32_0 : i32
    scf.if %2 {
      %cst_10 = arith.constant 0.000000e+00 : f32
      %12 = vector.broadcast %cst_10 : f32 to vector<512x128xf32>
      %c0_11 = arith.constant 0 : index
      %c0_12 = arith.constant 0 : index
      %13 = vector.load %arg6[%c0_11, %c0_12] : memref<512x128xf32, #tpu.memory_space<vmem>>, vector<512x128xf32>
      tpu.vector_store %arg6[%c0_11, %c0_12], %12 {strides = array<i32>} : memref<512x128xf32, #tpu.memory_space<vmem>>, vector<512x128xf32>,
    } else {
    }
    %c0 = arith.constant 0 : index
    %c0_1 = arith.constant 0 : index
    %3 = vector.load %arg6[%c0, %c0_1] : memref<512x128xf32, #tpu.memory_space<vmem>>, vector<512x128xf32>
    %c0_2 = arith.constant 0 : index
    %c0_3 = arith.constant 0 : index
    %4 = vector.load %arg2[%c0_2, %c0_3] : memref<512x128xbf16, #tpu.memory_space<vmem>>, vector<512x128xbf16>
    %c0_4 = arith.constant 0 : index
    %c0_5 = arith.constant 0 : index
    %5 = vector.load %arg3[%c0_4, %c0_5] : memref<128x128xbf16, #tpu.memory_space<vmem>>, vector<128x128xbf16>
    %cst = arith.constant dense<0.000000e+00> : vector<512x128xf32>
    %6 = tpu.matmul %4, %5, %cst {dimension_numbers = #tpu.dot_dimension_numbers<[1], [0], [0], [1], [0, 0, 1, 1], [], []>} : vector<512x128xbf16>, vector<128x128xbf16>, vector<512x128xf32> -> vector<512x128xf32>
    %7 = arith.addf %3, %6 : vector<512x128xf32>
    %c0_6 = arith.constant 0 : index
    %c0_7 = arith.constant 0 : index
    %8 = vector.load %arg6[%c0_6, %c0_7] : memref<512x128xf32, #tpu.memory_space<vmem>>, vector<512x128xf32>
    tpu.vector_store %arg6[%c0_6, %c0_7], %7 {strides = array<i32>} : memref<512x128xf32, #tpu.memory_space<vmem>>, vector<512x128xf32>,
    %c0_i32_8 = arith.constant 0 : i32
    %9 = arith.cmpi eq, %arg1, %c0_i32_8 : i32
    %10 = arith.extui %9 : i1 to i32
    %c0_i32_9 = arith.constant 0 : i32
    %11 = arith.cmpi ne, %10, %c0_i32_9 : i32
    scf.if %11 {
      %c0_10 = arith.constant 0 : index
      %c0_11 = arith.constant 0 : index
      %12 = vector.load %arg6[%c0_10, %c0_11] : memref<512x128xf32, #tpu.memory_space<vmem>>, vector<512x128xf32>
      %c0_12 = arith.constant 0 : index
      %c0_13 = arith.constant 0 : index
      %13 = vector.load %arg4[%c0_12, %c0_13] : memref<512x128xf32, #tpu.memory_space<vmem>>, vector<512x128xf32>
      tpu.vector_store %arg4[%c0_12, %c0_13], %12 {strides = array<i32>} : memref<512x128xf32, #tpu.memory_space<vmem>>, vector<512x128xf32>,
      %cst_14 = arith.constant dense<0.000000e+00> : vector<128xf32>
      %14 = vector.multi_reduction <add>, %12, %cst_14 [0] : vector<512x128xf32> to vector<128xf32>
      %15 = vector.shape_cast %14 : vector<128xf32> to vector<1x128xf32>
      %16 = arith.mulf %12, %12 : vector<512x128xf32>
      %cst_15 = arith.constant dense<0.000000e+00> : vector<128xf32>
      %17 = vector.multi_reduction <add>, %16, %cst_15 [0] : vector<512x128xf32> to vector<128xf32>
      %18 = vector.shape_cast %17 : vector<128xf32> to vector<1x128xf32>
      %19 = tpu.iota {dimensions = array<i32: 0>} : vector<8x128xi32>
      %c0_i32_16 = arith.constant 0 : i32
      %20 = vector.broadcast %c0_i32_16 : i32 to vector<8x128xi32>
      %21 = arith.cmpi eq, %19, %20 : vector<8x128xi32>
      %c1_i32 = arith.constant 1 : i32
      %22 = vector.broadcast %c1_i32 : i32 to vector<8x128xi32>
      %23 = arith.cmpi eq, %19, %22 : vector<8x128xi32>
      %cst_17 = arith.constant 0.000000e+00 : f32
      %24 = vector.shape_cast %18 : vector<1x128xf32> to vector<1x128xf32>
      %25 = vector.broadcast %24 : vector<1x128xf32> to vector<8x128xf32>
      %26 = vector.broadcast %cst_17 : f32 to vector<8x128xf32>
      %27 = arith.select %23, %25, %26 : vector<8x128xi1>, vector<8x128xf32>
      %28 = vector.shape_cast %15 : vector<1x128xf32> to vector<1x128xf32>
      %29 = vector.broadcast %28 : vector<1x128xf32> to vector<8x128xf32>
      %30 = arith.select %21, %29, %27 : vector<8x128xi1>, vector<8x128xf32>
      %c0_18 = arith.constant 0 : index
      %c0_19 = arith.constant 0 : index
      %31 = vector.load %arg5[%c0_18, %c0_19] : memref<8x128xf32, #tpu.memory_space<vmem>>, vector<8x128xf32>
      tpu.vector_store %arg5[%c0_18, %c0_19], %30 {strides = array<i32>} : memref<8x128xf32, #tpu.memory_space<vmem>>, vector<8x128xf32>,
    } else {
    }
    return
  }
  func.func @transform_0(%arg0: i32, %arg1: i32) -> (i32, i32) {
    %c0_i32 = arith.constant 0 : i32
    return %arg0, %arg1 : i32, i32
  }
  func.func @transform_1(%arg0: i32, %arg1: i32) -> (i32, i32) {
    %c0_i32 = arith.constant 0 : i32
    %c0_i32_0 = arith.constant 0 : i32
    return %arg1, %c0_i32 : i32, i32
  }
  func.func @transform_2(%arg0: i32, %arg1: i32) -> (i32, i32) {
    %c0_i32 = arith.constant 0 : i32
    %c0_i32_0 = arith.constant 0 : i32
    return %arg0, %c0_i32 : i32, i32
  }
  func.func @transform_3(%arg0: i32, %arg1: i32) -> (i32, i32) {
    %c0_i32 = arith.constant 0 : i32
    %c0_i32_0 = arith.constant 0 : i32
    return %arg0, %c0_i32 : i32, i32
  }
}

module attributes {stable_mosaic.version = 11 : i64} {
  func.func @bn_relu_kernel(%arg0: i32, %arg1: memref<512x128xf32, #tpu.memory_space<vmem>>, %arg2: memref<1x128xf32, #tpu.memory_space<vmem>>, %arg3: memref<1x128xf32, #tpu.memory_space<vmem>>, %arg4: memref<512x128xf32, #tpu.memory_space<vmem>>) attributes {dimension_semantics = [#tpu.dimension_semantics<parallel>], iteration_bounds = array<i64: 1>, scalar_prefetch = 0 : i64, scratch_operands = 0 : i64, tpu.core_type = #tpu.core_type<tc>, window_params = [{transform_indices = @transform_0, window_bounds = array<i64: 512, 128>}, {pipeline_mode = #tpu.pipeline_mode<synchronous>, transform_indices = @transform_1, window_bounds = array<i64: 1, 128>}, {pipeline_mode = #tpu.pipeline_mode<synchronous>, transform_indices = @transform_2, window_bounds = array<i64: 1, 128>}, {transform_indices = @transform_3, window_bounds = array<i64: 512, 128>}]} {
    %c0 = arith.constant 0 : index
    %c0_0 = arith.constant 0 : index
    %0 = vector.load %arg1[%c0, %c0_0] : memref<512x128xf32, #tpu.memory_space<vmem>>, vector<512x128xf32>
    %c0_1 = arith.constant 0 : index
    %c0_2 = arith.constant 0 : index
    %1 = vector.load %arg2[%c0_1, %c0_2] : memref<1x128xf32, #tpu.memory_space<vmem>>, vector<1x128xf32>
    %2 = vector.broadcast %1 : vector<1x128xf32> to vector<512x128xf32>
    %3 = arith.mulf %0, %2 : vector<512x128xf32>
    %c0_3 = arith.constant 0 : index
    %c0_4 = arith.constant 0 : index
    %4 = vector.load %arg3[%c0_3, %c0_4] : memref<1x128xf32, #tpu.memory_space<vmem>>, vector<1x128xf32>
    %5 = vector.broadcast %4 : vector<1x128xf32> to vector<512x128xf32>
    %6 = arith.addf %3, %5 : vector<512x128xf32>
    %cst = arith.constant 0.000000e+00 : f32
    %7 = vector.broadcast %cst : f32 to vector<512x128xf32>
    %8 = arith.maximumf %6, %7 : vector<512x128xf32>
    %c0_5 = arith.constant 0 : index
    %c0_6 = arith.constant 0 : index
    %9 = vector.load %arg4[%c0_5, %c0_6] : memref<512x128xf32, #tpu.memory_space<vmem>>, vector<512x128xf32>
    tpu.vector_store %arg4[%c0_5, %c0_6], %8 {strides = array<i32>} : memref<512x128xf32, #tpu.memory_space<vmem>>, vector<512x128xf32>,
    return
  }
  func.func @transform_0(%arg0: i32) -> (i32, i32) {
    %c0_i32 = arith.constant 0 : i32
    %c0_i32_0 = arith.constant 0 : i32
    return %arg0, %c0_i32 : i32, i32
  }
  func.func @transform_1(%arg0: i32) -> (i32, i32) {
    %c0_i32 = arith.constant 0 : i32
    %c0_i32_0 = arith.constant 0 : i32
    %c0_i32_1 = arith.constant 0 : i32
    return %c0_i32, %c0_i32_0 : i32, i32
  }
  func.func @transform_2(%arg0: i32) -> (i32, i32) {
    %c0_i32 = arith.constant 0 : i32
    %c0_i32_0 = arith.constant 0 : i32
    %c0_i32_1 = arith.constant 0 : i32
    return %c0_i32, %c0_i32_0 : i32, i32
  }
  func.func @transform_3(%arg0: i32) -> (i32, i32) {
    %c0_i32 = arith.constant 0 : i32
    %c0_i32_0 = arith.constant 0 : i32
    return %arg0, %c0_i32 : i32, i32
  }
}

</mosaic_0001>

<llo_original>
// kernel: conv_module_forward.3
$region0: #{conv_module_forward.3}
  #allocation0 [shape = 'u32[]', space=smem, size = 0x4, offset = 0x4, fixed_abs, tag = 'smem constant byte address 0x4 - core index']
  #allocation1 [shape = 'u32[72,128]{1,0:T(1,128)}', space=vmem, size = 0x9000, scoped, tag = 'internal scratch']
  %s0 = inlined_call_operand.vmem [shape: f32[512,128], index: 0, kind: input, shape index: {}, may-alias: {0,3}]
  %s1 = inlined_call_operand.vmem [shape: f32[1,128], index: 1, kind: input, shape index: {}]
  %s2 = inlined_call_operand.vmem [shape: f32[1,128], index: 2, kind: input, shape index: {}]
  %s3 = inlined_call_operand.vmem [shape: f32[512,128], index: 3, kind: output, shape index: {}, may-alias: {0,3}]
  %s4 = sld [smem:[#allocation0]]
  $region22: #{conv_module_forward.3} parent=0
    _
  %s6 = ssub.s32 1, %s4
  %s7 = scalar_select 0, %s6, %s4
  // Predicated region
  $region2: #{conv_module_forward.3} parent=0 // pred_check
    _
  $region3: #{conv_module_forward.3} parent=0 // pred_check_branch
    %9 = sbr.rel (0) target = $region5
  $region4: #{conv_module_forward.3} parent=0 // pred_region
    _
  $region5: #{conv_module_forward.3} parent=0 // pred_fallthru
    _
  // Predicated region
  $region6: #{conv_module_forward.3} parent=0 // pred_check
    _
  $region7: #{conv_module_forward.3} parent=0 // pred_check_branch
    %11 = sbr.rel (0) target = $region9
  $region8: #{conv_module_forward.3} parent=0 // pred_region
    _
  $region9: #{conv_module_forward.3} parent=0 // pred_fallthru
    _
  // Predicated region
  $region10: #{conv_module_forward.3} parent=0 // pred_check
    _
  $region11: #{conv_module_forward.3} parent=0 // pred_check_branch
    %13 = sbr.rel (0) target = $region13
  $region12: #{conv_module_forward.3} parent=0 // pred_region
    _
  $region13: #{conv_module_forward.3} parent=0 // pred_fallthru
    _
  %v14 = vld [vmem:[%s0] sm:$0xff]
  %v15 = vld [vmem:[%s0 + $0x8] sm:$0xff]
  %v16 = vld [vmem:[%s0 + $0x10] sm:$0xff]
  %v17 = vld [vmem:[%s0 + $0x18] sm:$0xff]
  %v18 = vld [vmem:[%s0 + $0x20] sm:$0xff]
  %v19 = vld [vmem:[%s0 + $0x28] sm:$0xff]
  %v20 = vld [vmem:[%s0 + $0x30] sm:$0xff]
  %v21 = vld [vmem:[%s0 + $0x38] sm:$0xff]
  %v22 = vld [vmem:[%s0 + $0x40] sm:$0xff]
  %v23 = vld [vmem:[%s0 + $0x48] sm:$0xff]
  %v24 = vld [vmem:[%s0 + $0x50] sm:$0xff]
  %v25 = vld [vmem:[%s0 + $0x58] sm:$0xff]
  %v26 = vld [vmem:[%s0 + $0x60] sm:$0xff]
  %v27 = vld [vmem:[%s0 + $0x68] sm:$0xff]
  %v28 = vld [vmem:[%s0 + $0x70] sm:$0xff]
  %v29 = vld [vmem:[%s0 + $0x78] sm:$0xff]
  %v30 = vld [vmem:[%s0 + $0x80] sm:$0xff]
  %v31 = vld [vmem:[%s0 + $0x88] sm:$0xff]
  %v32 = vld [vmem:[%s0 + $0x90] sm:$0xff]
  %v33 = vld [vmem:[%s0 + $0x98] sm:$0xff]
  %v34 = vld [vmem:[%s0 + $0xa0] sm:$0xff]
  %v35 = vld [vmem:[%s0 + $0xa8] sm:$0xff]
  %v36 = vld [vmem:[%s0 + $0xb0] sm:$0xff]
  %v37 = vld [vmem:[%s0 + $0xb8] sm:$0xff]
  %v38 = vld [vmem:[%s0 + $0xc0] sm:$0xff]
  %v39 = vld [vmem:[%s0 + $0xc8] sm:$0xff]
  %v40 = vld [vmem:[%s0 + $0xd0] sm:$0xff]
  %v41 = vld [vmem:[%s0 + $0xd8] sm:$0xff]
  %v42 = vld [vmem:[%s0 + $0xe0] sm:$0xff]
  %v43 = vld [vmem:[%s0 + $0xe8] sm:$0xff]
  %v44 = vld [vmem:[%s0 + $0xf0] sm:$0xff]
  %v45 = vld [vmem:[%s0 + $0xf8] sm:$0xff]
  %v46 = vld [vmem:[%s0 + $0x100] sm:$0xff]
  %v47 = vld [vmem:[%s0 + $0x108] sm:$0xff]
  %v48 = vld [vmem:[%s0 + $0x110] sm:$0xff]
  %v49 = vld [vmem:[%s0 + $0x118] sm:$0xff]
  %v50 = vld [vmem:[%s0 + $0x120] sm:$0xff]
  %v51 = vld [vmem:[%s0 + $0x128] sm:$0xff]
  %v52 = vld [vmem:[%s0 + $0x130] sm:$0xff]
  %v53 = vld [vmem:[%s0 + $0x138] sm:$0xff]
  %v54 = vld [vmem:[%s0 + $0x140] sm:$0xff]
  %v55 = vld [vmem:[%s0 + $0x148] sm:$0xff]
  %v56 = vld [vmem:[%s0 + $0x150] sm:$0xff]
  %v57 = vld [vmem:[%s0 + $0x158] sm:$0xff]
  %v58 = vld [vmem:[%s0 + $0x160] sm:$0xff]
  %v59 = vld [vmem:[%s0 + $0x168] sm:$0xff]
  %v60 = vld [vmem:[%s0 + $0x170] sm:$0xff]
  %v61 = vld [vmem:[%s0 + $0x178] sm:$0xff]
  %v62 = vld [vmem:[%s0 + $0x180] sm:$0xff]
  %v63 = vld [vmem:[%s0 + $0x188] sm:$0xff]
  %v64 = vld [vmem:[%s0 + $0x190] sm:$0xff]
  %v65 = vld [vmem:[%s0 + $0x198] sm:$0xff]
  %v66 = vld [vmem:[%s0 + $0x1a0] sm:$0xff]
  %v67 = vld [vmem:[%s0 + $0x1a8] sm:$0xff]
  %v68 = vld [vmem:[%s0 + $0x1b0] sm:$0xff]
  %v69 = vld [vmem:[%s0 + $0x1b8] sm:$0xff]
  %v70 = vld [vmem:[%s0 + $0x1c0] sm:$0xff]
  %v71 = vld [vmem:[%s0 + $0x1c8] sm:$0xff]
  %v72 = vld [vmem:[%s0 + $0x1d0] sm:$0xff]
  %v73 = vld [vmem:[%s0 + $0x1d8] sm:$0xff]
  %v74 = vld [vmem:[%s0 + $0x1e0] sm:$0xff]
  %v75 = vld [vmem:[%s0 + $0x1e8] sm:$0xff]
  %v76 = vld [vmem:[%s0 + $0x1f0] sm:$0xff]
  %v77 = vld [vmem:[%s0 + $0x1f8] sm:$0xff]
  %v78 = vld [vmem:[%s1] sm:$0x1]
  %v80 = vperm.slane %v78, 0
  %v82 = vmul.f32 %v14, %v80
  %v83 = vmul.f32 %v15, %v80
  %v84 = vmul.f32 %v16, %v80
  %v85 = vmul.f32 %v17, %v80
  %v86 = vmul.f32 %v18, %v80
  %v87 = vmul.f32 %v19, %v80
  %v88 = vmul.f32 %v20, %v80
  %v89 = vmul.f32 %v21, %v80
  %v90 = vmul.f32 %v22, %v80
  %v91 = vmul.f32 %v23, %v80
  %v92 = vmul.f32 %v24, %v80
  %v93 = vmul.f32 %v25, %v80
  %v94 = vmul.f32 %v26, %v80
  %v95 = vmul.f32 %v27, %v80
  %v96 = vmul.f32 %v28, %v80
  %v97 = vmul.f32 %v29, %v80
  %v98 = vmul.f32 %v30, %v80
  %v99 = vmul.f32 %v31, %v80
  %v100 = vmul.f32 %v32, %v80
  %v101 = vmul.f32 %v33, %v80
  %v102 = vmul.f32 %v34, %v80
  %v103 = vmul.f32 %v35, %v80
  %v104 = vmul.f32 %v36, %v80
  %v105 = vmul.f32 %v37, %v80
  %v106 = vmul.f32 %v38, %v80
  %v107 = vmul.f32 %v39, %v80
  %v108 = vmul.f32 %v40, %v80
  %v109 = vmul.f32 %v41, %v80
  %v110 = vmul.f32 %v42, %v80
  %v111 = vmul.f32 %v43, %v80
  %v112 = vmul.f32 %v44, %v80
  %v113 = vmul.f32 %v45, %v80
  %v114 = vmul.f32 %v46, %v80
  %v115 = vmul.f32 %v47, %v80
  %v116 = vmul.f32 %v48, %v80
  %v117 = vmul.f32 %v49, %v80
  %v118 = vmul.f32 %v50, %v80
  %v119 = vmul.f32 %v51, %v80
  %v120 = vmul.f32 %v52, %v80
  %v121 = vmul.f32 %v53, %v80
  %v122 = vmul.f32 %v54, %v80
  %v123 = vmul.f32 %v55, %v80
  %v124 = vmul.f32 %v56, %v80
  %v125 = vmul.f32 %v57, %v80
  %v126 = vmul.f32 %v58, %v80
  %v127 = vmul.f32 %v59, %v80
  %v128 = vmul.f32 %v60, %v80
  %v129 = vmul.f32 %v61, %v80
  %v130 = vmul.f32 %v62, %v80
  %v131 = vmul.f32 %v63, %v80
  %v132 = vmul.f32 %v64, %v80
  %v133 = vmul.f32 %v65, %v80
  %v134 = vmul.f32 %v66, %v80
  %v135 = vmul.f32 %v67, %v80
  %v136 = vmul.f32 %v68, %v80
  %v137 = vmul.f32 %v69, %v80
  %v138 = vmul.f32 %v70, %v80
  %v139 = vmul.f32 %v71, %v80
  %v140 = vmul.f32 %v72, %v80
  %v141 = vmul.f32 %v73, %v80
  %v142 = vmul.f32 %v74, %v80
  %v143 = vmul.f32 %v75, %v80
  %v144 = vmul.f32 %v76, %v80
  %v145 = vmul.f32 %v77, %v80
  %v146 = vld [vmem:[%s2] sm:$0x1]
  %v148 = vperm.slane %v146, 0
  %v150 = vadd.f32 %v82, %v148
  %v151 = vadd.f32 %v83, %v148
  %v152 = vadd.f32 %v84, %v148
  %v153 = vadd.f32 %v85, %v148
  %v154 = vadd.f32 %v86, %v148
  %v155 = vadd.f32 %v87, %v148
  %v156 = vadd.f32 %v88, %v148
  %v157 = vadd.f32 %v89, %v148
  %v158 = vadd.f32 %v90, %v148
  %v159 = vadd.f32 %v91, %v148
  %v160 = vadd.f32 %v92, %v148
  %v161 = vadd.f32 %v93, %v148
  %v162 = vadd.f32 %v94, %v148
  %v163 = vadd.f32 %v95, %v148
  %v164 = vadd.f32 %v96, %v148
  %v165 = vadd.f32 %v97, %v148
  %v166 = vadd.f32 %v98, %v148
  %v167 = vadd.f32 %v99, %v148
  %v168 = vadd.f32 %v100, %v148
  %v169 = vadd.f32 %v101, %v148
  %v170 = vadd.f32 %v102, %v148
  %v171 = vadd.f32 %v103, %v148
  %v172 = vadd.f32 %v104, %v148
  %v173 = vadd.f32 %v105, %v148
  %v174 = vadd.f32 %v106, %v148
  %v175 = vadd.f32 %v107, %v148
  %v176 = vadd.f32 %v108, %v148
  %v177 = vadd.f32 %v109, %v148
  %v178 = vadd.f32 %v110, %v148
  %v179 = vadd.f32 %v111, %v148
  %v180 = vadd.f32 %v112, %v148
  %v181 = vadd.f32 %v113, %v148
  %v182 = vadd.f32 %v114, %v148
  %v183 = vadd.f32 %v115, %v148
  %v184 = vadd.f32 %v116, %v148
  %v185 = vadd.f32 %v117, %v148
  %v186 = vadd.f32 %v118, %v148
  %v187 = vadd.f32 %v119, %v148
  %v188 = vadd.f32 %v120, %v148
  %v189 = vadd.f32 %v121, %v148
  %v190 = vadd.f32 %v122, %v148
  %v191 = vadd.f32 %v123, %v148
  %v192 = vadd.f32 %v124, %v148
  %v193 = vadd.f32 %v125, %v148
  %v194 = vadd.f32 %v126, %v148
  %v195 = vadd.f32 %v127, %v148
  %v196 = vadd.f32 %v128, %v148
  %v197 = vadd.f32 %v129, %v148
  %v198 = vadd.f32 %v130, %v148
  %v199 = vadd.f32 %v131, %v148
  %v200 = vadd.f32 %v132, %v148
  %v201 = vadd.f32 %v133, %v148
  %v202 = vadd.f32 %v134, %v148
  %v203 = vadd.f32 %v135, %v148
  %v204 = vadd.f32 %v136, %v148
  %v205 = vadd.f32 %v137, %v148
  %v206 = vadd.f32 %v138, %v148
  %v207 = vadd.f32 %v139, %v148
  %v208 = vadd.f32 %v140, %v148
  %v209 = vadd.f32 %v141, %v148
  %v210 = vadd.f32 %v142, %v148
  %v211 = vadd.f32 %v143, %v148
  %v212 = vadd.f32 %v144, %v148
  %v213 = vadd.f32 %v145, %v148
  %v214 = vmax.f32 %v150, 0.0
  %v215 = vmax.f32 %v151, 0.0
  %v216 = vmax.f32 %v152, 0.0
  %v217 = vmax.f32 %v153, 0.0
  %v218 = vmax.f32 %v154, 0.0
  %v219 = vmax.f32 %v155, 0.0
  %v220 = vmax.f32 %v156, 0.0
  %v221 = vmax.f32 %v157, 0.0
  %v222 = vmax.f32 %v158, 0.0
  %v223 = vmax.f32 %v159, 0.0
  %v224 = vmax.f32 %v160, 0.0
  %v225 = vmax.f32 %v161, 0.0
  %v226 = vmax.f32 %v162, 0.0
  %v227 = vmax.f32 %v163, 0.0
  %v228 = vmax.f32 %v164, 0.0
  %v229 = vmax.f32 %v165, 0.0
  %v230 = vmax.f32 %v166, 0.0
  %v231 = vmax.f32 %v167, 0.0
  %v232 = vmax.f32 %v168, 0.0
  %v233 = vmax.f32 %v169, 0.0
  %v234 = vmax.f32 %v170, 0.0
  %v235 = vmax.f32 %v171, 0.0
  %v236 = vmax.f32 %v172, 0.0
  %v237 = vmax.f32 %v173, 0.0
  %v238 = vmax.f32 %v174, 0.0
  %v239 = vmax.f32 %v175, 0.0
  %v240 = vmax.f32 %v176, 0.0
  %v241 = vmax.f32 %v177, 0.0
  %v242 = vmax.f32 %v178, 0.0
  %v243 = vmax.f32 %v179, 0.0
  %v244 = vmax.f32 %v180, 0.0
  %v245 = vmax.f32 %v181, 0.0
  %v246 = vmax.f32 %v182, 0.0
  %v247 = vmax.f32 %v183, 0.0
  %v248 = vmax.f32 %v184, 0.0
  %v249 = vmax.f32 %v185, 0.0
  %v250 = vmax.f32 %v186, 0.0
  %v251 = vmax.f32 %v187, 0.0
  %v252 = vmax.f32 %v188, 0.0
  %v253 = vmax.f32 %v189, 0.0
  %v254 = vmax.f32 %v190, 0.0
  %v255 = vmax.f32 %v191, 0.0
  %v256 = vmax.f32 %v192, 0.0
  %v257 = vmax.f32 %v193, 0.0
  %v258 = vmax.f32 %v194, 0.0
  %v259 = vmax.f32 %v195, 0.0
  %v260 = vmax.f32 %v196, 0.0
  %v261 = vmax.f32 %v197, 0.0
  %v262 = vmax.f32 %v198, 0.0
  %v263 = vmax.f32 %v199, 0.0
  %v264 = vmax.f32 %v200, 0.0
  %v265 = vmax.f32 %v201, 0.0
  %v266 = vmax.f32 %v202, 0.0
  %v267 = vmax.f32 %v203, 0.0
  %v268 = vmax.f32 %v204, 0.0
  %v269 = vmax.f32 %v205, 0.0
  %v270 = vmax.f32 %v206, 0.0
  %v271 = vmax.f32 %v207, 0.0
  %v272 = vmax.f32 %v208, 0.0
  %v273 = vmax.f32 %v209, 0.0
  %v274 = vmax.f32 %v210, 0.0
  %v275 = vmax.f32 %v211, 0.0
  %v276 = vmax.f32 %v212, 0.0
  %v277 = vmax.f32 %v213, 0.0
  %278 = vst [vmem:[%s3] sm:$0xff] %v214
  %279 = vst [vmem:[%s3 + $0x8] sm:$0xff] %v215
  %280 = vst [vmem:[%s3 + $0x10] sm:$0xff] %v216
  %281 = vst [vmem:[%s3 + $0x18] sm:$0xff] %v217
  %282 = vst [vmem:[%s3 + $0x20] sm:$0xff] %v218
  %283 = vst [vmem:[%s3 + $0x28] sm:$0xff] %v219
  %284 = vst [vmem:[%s3 + $0x30] sm:$0xff] %v220
  %285 = vst [vmem:[%s3 + $0x38] sm:$0xff] %v221
  %286 = vst [vmem:[%s3 + $0x40] sm:$0xff] %v222
  %287 = vst [vmem:[%s3 + $0x48] sm:$0xff] %v223
  %288 = vst [vmem:[%s3 + $0x50] sm:$0xff] %v224
  %289 = vst [vmem:[%s3 + $0x58] sm:$0xff] %v225
  %290 = vst [vmem:[%s3 + $0x60] sm:$0xff] %v226
  %291 = vst [vmem:[%s3 + $0x68] sm:$0xff] %v227
  %292 = vst [vmem:[%s3 + $0x70] sm:$0xff] %v228
  %293 = vst [vmem:[%s3 + $0x78] sm:$0xff] %v229
  %294 = vst [vmem:[%s3 + $0x80] sm:$0xff] %v230
  %295 = vst [vmem:[%s3 + $0x88] sm:$0xff] %v231
  %296 = vst [vmem:[%s3 + $0x90] sm:$0xff] %v232
  %297 = vst [vmem:[%s3 + $0x98] sm:$0xff] %v233
  %298 = vst [vmem:[%s3 + $0xa0] sm:$0xff] %v234
  %299 = vst [vmem:[%s3 + $0xa8] sm:$0xff] %v235
  %300 = vst [vmem:[%s3 + $0xb0] sm:$0xff] %v236
  %301 = vst [vmem:[%s3 + $0xb8] sm:$0xff] %v237
  %302 = vst [vmem:[%s3 + $0xc0] sm:$0xff] %v238
  %303 = vst [vmem:[%s3 + $0xc8] sm:$0xff] %v239
  %304 = vst [vmem:[%s3 + $0xd0] sm:$0xff] %v240
  %305 = vst [vmem:[%s3 + $0xd8] sm:$0xff] %v241
  %306 = vst [vmem:[%s3 + $0xe0] sm:$0xff] %v242
  %307 = vst [vmem:[%s3 + $0xe8] sm:$0xff] %v243
  %308 = vst [vmem:[%s3 + $0xf0] sm:$0xff] %v244
  %309 = vst [vmem:[%s3 + $0xf8] sm:$0xff] %v245
  %310 = vst [vmem:[%s3 + $0x100] sm:$0xff] %v246
  %311 = vst [vmem:[%s3 + $0x108] sm:$0xff] %v247
  %312 = vst [vmem:[%s3 + $0x110] sm:$0xff] %v248
  %313 = vst [vmem:[%s3 + $0x118] sm:$0xff] %v249
  %314 = vst [vmem:[%s3 + $0x120] sm:$0xff] %v250
  %315 = vst [vmem:[%s3 + $0x128] sm:$0xff] %v251
  %316 = vst [vmem:[%s3 + $0x130] sm:$0xff] %v252
  %317 = vst [vmem:[%s3 + $0x138] sm:$0xff] %v253
  %318 = vst [vmem:[%s3 + $0x140] sm:$0xff] %v254
  %319 = vst [vmem:[%s3 + $0x148] sm:$0xff] %v255
  %320 = vst [vmem:[%s3 + $0x150] sm:$0xff] %v256
  %321 = vst [vmem:[%s3 + $0x158] sm:$0xff] %v257
  %322 = vst [vmem:[%s3 + $0x160] sm:$0xff] %v258
  %323 = vst [vmem:[%s3 + $0x168] sm:$0xff] %v259
  %324 = vst [vmem:[%s3 + $0x170] sm:$0xff] %v260
  %325 = vst [vmem:[%s3 + $0x178] sm:$0xff] %v261
  %326 = vst [vmem:[%s3 + $0x180] sm:$0xff] %v262
  %327 = vst [vmem:[%s3 + $0x188] sm:$0xff] %v263
  %328 = vst [vmem:[%s3 + $0x190] sm:$0xff] %v264
  %329 = vst [vmem:[%s3 + $0x198] sm:$0xff] %v265
  %330 = vst [vmem:[%s3 + $0x1a0] sm:$0xff] %v266
  %331 = vst [vmem:[%s3 + $0x1a8] sm:$0xff] %v267
  %332 = vst [vmem:[%s3 + $0x1b0] sm:$0xff] %v268
  %333 = vst [vmem:[%s3 + $0x1b8] sm:$0xff] %v269
  %334 = vst [vmem:[%s3 + $0x1c0] sm:$0xff] %v270
  %335 = vst [vmem:[%s3 + $0x1c8] sm:$0xff] %v271
  %336 = vst [vmem:[%s3 + $0x1d0] sm:$0xff] %v272
  %337 = vst [vmem:[%s3 + $0x1d8] sm:$0xff] %v273
  %338 = vst [vmem:[%s3 + $0x1e0] sm:$0xff] %v274
  %339 = vst [vmem:[%s3 + $0x1e8] sm:$0xff] %v275
  %340 = vst [vmem:[%s3 + $0x1f0] sm:$0xff] %v276
  %341 = vst [vmem:[%s3 + $0x1f8] sm:$0xff] %v277
  // Predicated region
  $region14: #{conv_module_forward.3} parent=0 // pred_check
    _
  $region15: #{conv_module_forward.3} parent=0 // pred_check_branch
    %343 = sbr.rel (0) target = $region17
  $region16: #{conv_module_forward.3} parent=0 // pred_region
    _
  $region17: #{conv_module_forward.3} parent=0 // pred_fallthru
    _
  // Predicated region
  $region18: #{conv_module_forward.3} parent=0 // pred_check
    _
  $region19: #{conv_module_forward.3} parent=0 // pred_check_branch
    %345 = sbr.rel (0) target = $region21
  $region20: #{conv_module_forward.3} parent=0 // pred_region
    _
  $region21: #{conv_module_forward.3} parent=0 // pred_fallthru
    _

// kernel: conv_module_forward.2
$region0: #{conv_module_forward.2}
  #allocation0 [shape = 'u32[]', space=smem, size = 0x4, offset = 0x4, fixed_abs, tag = 'smem constant byte address 0x4 - core index']
  #allocation1 [shape = 'u32[72,128]{1,0:T(1,128)}', space=vmem, size = 0x9000, scoped, tag = 'internal scratch']
  #allocation2 [shape = 'f32[512,128]{1,0:T(8,128)}', space=vmem, size = 0x40000, scoped, tag = 'scratch operand']
  %s0 = inlined_call_operand.vmem [shape: bf16[512,128], index: 0, kind: input, shape index: {}]
  %s1 = inlined_call_operand.vmem [shape: bf16[128,128], index: 1, kind: input, shape index: {}]
  %s2 = inlined_call_operand.vmem [shape: f32[512,128], index: 2, kind: output, shape index: {0}]
  %s3 = inlined_call_operand.vmem [shape: f32[8,128], index: 3, kind: output, shape index: {1}]
  %4 = xla_tuple %s2, %s3
  %s5 = sld [smem:[#allocation0]]
  $region34: #{conv_module_forward.2} parent=0
    _
  %s7 = ssub.s32 1, %s5
  %s8 = scalar_select 0, %s7, %s5
  // Predicated region
  $region2: #{conv_module_forward.2} parent=0 // pred_check
    _
  $region3: #{conv_module_forward.2} parent=0 // pred_check_branch
    %10 = sbr.rel (0) target = $region5
  $region4: #{conv_module_forward.2} parent=0 // pred_region
    _
  $region5: #{conv_module_forward.2} parent=0 // pred_fallthru
    _
  // Predicated region
  $region6: #{conv_module_forward.2} parent=0 // pred_check
    _
  $region7: #{conv_module_forward.2} parent=0 // pred_check_branch
    %12 = sbr.rel (0) target = $region9
  $region8: #{conv_module_forward.2} parent=0 // pred_region
    _
  $region9: #{conv_module_forward.2} parent=0 // pred_fallthru
    _
  %p13 = scmp.eq.s32.totalorder 0, 0
  // Predicated region
  $region10: #{conv_module_forward.2} parent=0 // pred_check
    %p14 = pneg %p13
  $region11: #{conv_module_forward.2} parent=0 // pred_check_branch
    %16 = sbr.rel (%p14) target = $region13
  $region12: #{conv_module_forward.2} parent=0 // pred_region
    %17 = vst [vmem:[#allocation2] sm:$0xff] 0.0
    %18 = vst [vmem:[#allocation2 + $0x8] sm:$0xff] 0.0
    %19 = vst [vmem:[#allocation2 + $0x10] sm:$0xff] 0.0
    %20 = vst [vmem:[#allocation2 + $0x18] sm:$0xff] 0.0
    %21 = vst [vmem:[#allocation2 + $0x20] sm:$0xff] 0.0
    %22 = vst [vmem:[#allocation2 + $0x28] sm:$0xff] 0.0
    %23 = vst [vmem:[#allocation2 + $0x30] sm:$0xff] 0.0
    %24 = vst [vmem:[#allocation2 + $0x38] sm:$0xff] 0.0
    %25 = vst [vmem:[#allocation2 + $0x40] sm:$0xff] 0.0
    %26 = vst [vmem:[#allocation2 + $0x48] sm:$0xff] 0.0
    %27 = vst [vmem:[#allocation2 + $0x50] sm:$0xff] 0.0
    %28 = vst [vmem:[#allocation2 + $0x58] sm:$0xff] 0.0
    %29 = vst [vmem:[#allocation2 + $0x60] sm:$0xff] 0.0
    %30 = vst [vmem:[#allocation2 + $0x68] sm:$0xff] 0.0
    %31 = vst [vmem:[#allocation2 + $0x70] sm:$0xff] 0.0
    %32 = vst [vmem:[#allocation2 + $0x78] sm:$0xff] 0.0
    %33 = vst [vmem:[#allocation2 + $0x80] sm:$0xff] 0.0
    %34 = vst [vmem:[#allocation2 + $0x88] sm:$0xff] 0.0
    %35 = vst [vmem:[#allocation2 + $0x90] sm:$0xff] 0.0
    %36 = vst [vmem:[#allocation2 + $0x98] sm:$0xff] 0.0
    %37 = vst [vmem:[#allocation2 + $0xa0] sm:$0xff] 0.0
    %38 = vst [vmem:[#allocation2 + $0xa8] sm:$0xff] 0.0
    %39 = vst [vmem:[#allocation2 + $0xb0] sm:$0xff] 0.0
    %40 = vst [vmem:[#allocation2 + $0xb8] sm:$0xff] 0.0
    %41 = vst [vmem:[#allocation2 + $0xc0] sm:$0xff] 0.0
    %42 = vst [vmem:[#allocation2 + $0xc8] sm:$0xff] 0.0
    %43 = vst [vmem:[#allocation2 + $0xd0] sm:$0xff] 0.0
    %44 = vst [vmem:[#allocation2 + $0xd8] sm:$0xff] 0.0
    %45 = vst [vmem:[#allocation2 + $0xe0] sm:$0xff] 0.0
    %46 = vst [vmem:[#allocation2 + $0xe8] sm:$0xff] 0.0
    %47 = vst [vmem:[#allocation2 + $0xf0] sm:$0xff] 0.0
    %48 = vst [vmem:[#allocation2 + $0xf8] sm:$0xff] 0.0
    %49 = vst [vmem:[#allocation2 + $0x100] sm:$0xff] 0.0
    %50 = vst [vmem:[#allocation2 + $0x108] sm:$0xff] 0.0
    %51 = vst [vmem:[#allocation2 + $0x110] sm:$0xff] 0.0
    %52 = vst [vmem:[#allocation2 + $0x118] sm:$0xff] 0.0
    %53 = vst [vmem:[#allocation2 + $0x120] sm:$0xff] 0.0
    %54 = vst [vmem:[#allocation2 + $0x128] sm:$0xff] 0.0
    %55 = vst [vmem:[#allocation2 + $0x130] sm:$0xff] 0.0
    %56 = vst [vmem:[#allocation2 + $0x138] sm:$0xff] 0.0
    %57 = vst [vmem:[#allocation2 + $0x140] sm:$0xff] 0.0
    %58 = vst [vmem:[#allocation2 + $0x148] sm:$0xff] 0.0
    %59 = vst [vmem:[#allocation2 + $0x150] sm:$0xff] 0.0
    %60 = vst [vmem:[#allocation2 + $0x158] sm:$0xff] 0.0
    %61 = vst [vmem:[#allocation2 + $0x160] sm:$0xff] 0.0
    %62 = vst [vmem:[#allocation2 + $0x168] sm:$0xff] 0.0
    %63 = vst [vmem:[#allocation2 + $0x170] sm:$0xff] 0.0
    %64 = vst [vmem:[#allocation2 + $0x178] sm:$0xff] 0.0
    %65 = vst [vmem:[#allocation2 + $0x180] sm:$0xff] 0.0
    %66 = vst [vmem:[#allocation2 + $0x188] sm:$0xff] 0.0
    %67 = vst [vmem:[#allocation2 + $0x190] sm:$0xff] 0.0
    %68 = vst [vmem:[#allocation2 + $0x198] sm:$0xff] 0.0
    %69 = vst [vmem:[#allocation2 + $0x1a0] sm:$0xff] 0.0
    %70 = vst [vmem:[#allocation2 + $0x1a8] sm:$0xff] 0.0
    %71 = vst [vmem:[#allocation2 + $0x1b0] sm:$0xff] 0.0
    %72 = vst [vmem:[#allocation2 + $0x1b8] sm:$0xff] 0.0
    %73 = vst [vmem:[#allocation2 + $0x1c0] sm:$0xff] 0.0
    %74 = vst [vmem:[#allocation2 + $0x1c8] sm:$0xff] 0.0
    %75 = vst [vmem:[#allocation2 + $0x1d0] sm:$0xff] 0.0
    %76 = vst [vmem:[#allocation2 + $0x1d8] sm:$0xff] 0.0
    %77 = vst [vmem:[#allocation2 + $0x1e0] sm:$0xff] 0.0
    %78 = vst [vmem:[#allocation2 + $0x1e8] sm:$0xff] 0.0
    %79 = vst [vmem:[#allocation2 + $0x1f0] sm:$0xff] 0.0
    %80 = vst [vmem:[#allocation2 + $0x1f8] sm:$0xff] 0.0
  $region13: #{conv_module_forward.2} parent=0 // pred_fallthru
    _
  %v81 = vld [vmem:[#allocation2] sm:$0xff]
  %v82 = vld [vmem:[#allocation2 + $0x8] sm:$0xff]
  %v83 = vld [vmem:[#allocation2 + $0x10] sm:$0xff]
  %v84 = vld [vmem:[#allocation2 + $0x18] sm:$0xff]
  %v85 = vld [vmem:[#allocation2 + $0x20] sm:$0xff]
  %v86 = vld [vmem:[#allocation2 + $0x28] sm:$0xff]
  %v87 = vld [vmem:[#allocation2 + $0x30] sm:$0xff]
  %v88 = vld [vmem:[#allocation2 + $0x38] sm:$0xff]
  %v89 = vld [vmem:[#allocation2 + $0x40] sm:$0xff]
  %v90 = vld [vmem:[#allocation2 + $0x48] sm:$0xff]
  %v91 = vld [vmem:[#allocation2 + $0x50] sm:$0xff]
  %v92 = vld [vmem:[#allocation2 + $0x58] sm:$0xff]
  %v93 = vld [vmem:[#allocation2 + $0x60] sm:$0xff]
  %v94 = vld [vmem:[#allocation2 + $0x68] sm:$0xff]
  %v95 = vld [vmem:[#allocation2 + $0x70] sm:$0xff]
  %v96 = vld [vmem:[#allocation2 + $0x78] sm:$0xff]
  %v97 = vld [vmem:[#allocation2 + $0x80] sm:$0xff]
  %v98 = vld [vmem:[#allocation2 + $0x88] sm:$0xff]
  %v99 = vld [vmem:[#allocation2 + $0x90] sm:$0xff]
  %v100 = vld [vmem:[#allocation2 + $0x98] sm:$0xff]
  %v101 = vld [vmem:[#allocation2 + $0xa0] sm:$0xff]
  %v102 = vld [vmem:[#allocation2 + $0xa8] sm:$0xff]
  %v103 = vld [vmem:[#allocation2 + $0xb0] sm:$0xff]
  %v104 = vld [vmem:[#allocation2 + $0xb8] sm:$0xff]
  %v105 = vld [vmem:[#allocation2 + $0xc0] sm:$0xff]
  %v106 = vld [vmem:[#allocation2 + $0xc8] sm:$0xff]
  %v107 = vld [vmem:[#allocation2 + $0xd0] sm:$0xff]
  %v108 = vld [vmem:[#allocation2 + $0xd8] sm:$0xff]
  %v109 = vld [vmem:[#allocation2 + $0xe0] sm:$0xff]
  %v110 = vld [vmem:[#allocation2 + $0xe8] sm:$0xff]
  %v111 = vld [vmem:[#allocation2 + $0xf0] sm:$0xff]
  %v112 = vld [vmem:[#allocation2 + $0xf8] sm:$0xff]
  %v113 = vld [vmem:[#allocation2 + $0x100] sm:$0xff]
  %v114 = vld [vmem:[#allocation2 + $0x108] sm:$0xff]
  %v115 = vld [vmem:[#allocation2 + $0x110] sm:$0xff]
  %v116 = vld [vmem:[#allocation2 + $0x118] sm:$0xff]
  %v117 = vld [vmem:[#allocation2 + $0x120] sm:$0xff]
  %v118 = vld [vmem:[#allocation2 + $0x128] sm:$0xff]
  %v119 = vld [vmem:[#allocation2 + $0x130] sm:$0xff]
  %v120 = vld [vmem:[#allocation2 + $0x138] sm:$0xff]
  %v121 = vld [vmem:[#allocation2 + $0x140] sm:$0xff]
  %v122 = vld [vmem:[#allocation2 + $0x148] sm:$0xff]
  %v123 = vld [vmem:[#allocation2 + $0x150] sm:$0xff]
  %v124 = vld [vmem:[#allocation2 + $0x158] sm:$0xff]
  %v125 = vld [vmem:[#allocation2 + $0x160] sm:$0xff]
  %v126 = vld [vmem:[#allocation2 + $0x168] sm:$0xff]
  %v127 = vld [vmem:[#allocation2 + $0x170] sm:$0xff]
  %v128 = vld [vmem:[#allocation2 + $0x178] sm:$0xff]
  %v129 = vld [vmem:[#allocation2 + $0x180] sm:$0xff]
  %v130 = vld [vmem:[#allocation2 + $0x188] sm:$0xff]
  %v131 = vld [vmem:[#allocation2 + $0x190] sm:$0xff]
  %v132 = vld [vmem:[#allocation2 + $0x198] sm:$0xff]
  %v133 = vld [vmem:[#allocation2 + $0x1a0] sm:$0xff]
  %v134 = vld [vmem:[#allocation2 + $0x1a8] sm:$0xff]
  %v135 = vld [vmem:[#allocation2 + $0x1b0] sm:$0xff]
  %v136 = vld [vmem:[#allocation2 + $0x1b8] sm:$0xff]
  %v137 = vld [vmem:[#allocation2 + $0x1c0] sm:$0xff]
  %v138 = vld [vmem:[#allocation2 + $0x1c8] sm:$0xff]
  %v139 = vld [vmem:[#allocation2 + $0x1d0] sm:$0xff]
  %v140 = vld [vmem:[#allocation2 + $0x1d8] sm:$0xff]
  %v141 = vld [vmem:[#allocation2 + $0x1e0] sm:$0xff]
  %v142 = vld [vmem:[#allocation2 + $0x1e8] sm:$0xff]
  %v143 = vld [vmem:[#allocation2 + $0x1f0] sm:$0xff]
  %v144 = vld [vmem:[#allocation2 + $0x1f8] sm:$0xff]
  %v145 = vld [vmem:[%s0] sm:$0xf]
  %v146 = vld [vmem:[%s0 + $0x4] sm:$0xf]
  %v147 = vld [vmem:[%s0 + $0x8] sm:$0xf]
  %v148 = vld [vmem:[%s0 + $0xc] sm:$0xf]
  %v149 = vld [vmem:[%s0 + $0x10] sm:$0xf]
  %v150 = vld [vmem:[%s0 + $0x14] sm:$0xf]
  %v151 = vld [vmem:[%s0 + $0x18] sm:$0xf]
  %v152 = vld [vmem:[%s0 + $0x1c] sm:$0xf]
  %v153 = vld [vmem:[%s0 + $0x20] sm:$0xf]
  %v154 = vld [vmem:[%s0 + $0x24] sm:$0xf]
  %v155 = vld [vmem:[%s0 + $0x28] sm:$0xf]
  %v156 = vld [vmem:[%s0 + $0x2c] sm:$0xf]
  %v157 = vld [vmem:[%s0 + $0x30] sm:$0xf]
  %v158 = vld [vmem:[%s0 + $0x34] sm:$0xf]
  %v159 = vld [vmem:[%s0 + $0x38] sm:$0xf]
  %v160 = vld [vmem:[%s0 + $0x3c] sm:$0xf]
  %v161 = vld [vmem:[%s0 + $0x40] sm:$0xf]
  %v162 = vld [vmem:[%s0 + $0x44] sm:$0xf]
  %v163 = vld [vmem:[%s0 + $0x48] sm:$0xf]
  %v164 = vld [vmem:[%s0 + $0x4c] sm:$0xf]
  %v165 = vld [vmem:[%s0 + $0x50] sm:$0xf]
  %v166 = vld [vmem:[%s0 + $0x54] sm:$0xf]
  %v167 = vld [vmem:[%s0 + $0x58] sm:$0xf]
  %v168 = vld [vmem:[%s0 + $0x5c] sm:$0xf]
  %v169 = vld [vmem:[%s0 + $0x60] sm:$0xf]
  %v170 = vld [vmem:[%s0 + $0x64] sm:$0xf]
  %v171 = vld [vmem:[%s0 + $0x68] sm:$0xf]
  %v172 = vld [vmem:[%s0 + $0x6c] sm:$0xf]
  %v173 = vld [vmem:[%s0 + $0x70] sm:$0xf]
  %v174 = vld [vmem:[%s0 + $0x74] sm:$0xf]
  %v175 = vld [vmem:[%s0 + $0x78] sm:$0xf]
  %v176 = vld [vmem:[%s0 + $0x7c] sm:$0xf]
  %v177 = vld [vmem:[%s0 + $0x80] sm:$0xf]
  %v178 = vld [vmem:[%s0 + $0x84] sm:$0xf]
  %v179 = vld [vmem:[%s0 + $0x88] sm:$0xf]
  %v180 = vld [vmem:[%s0 + $0x8c] sm:$0xf]
  %v181 = vld [vmem:[%s0 + $0x90] sm:$0xf]
  %v182 = vld [vmem:[%s0 + $0x94] sm:$0xf]
  %v183 = vld [vmem:[%s0 + $0x98] sm:$0xf]
  %v184 = vld [vmem:[%s0 + $0x9c] sm:$0xf]
  %v185 = vld [vmem:[%s0 + $0xa0] sm:$0xf]
  %v186 = vld [vmem:[%s0 + $0xa4] sm:$0xf]
  %v187 = vld [vmem:[%s0 + $0xa8] sm:$0xf]
  %v188 = vld [vmem:[%s0 + $0xac] sm:$0xf]
  %v189 = vld [vmem:[%s0 + $0xb0] sm:$0xf]
  %v190 = vld [vmem:[%s0 + $0xb4] sm:$0xf]
  %v191 = vld [vmem:[%s0 + $0xb8] sm:$0xf]
  %v192 = vld [vmem:[%s0 + $0xbc] sm:$0xf]
  %v193 = vld [vmem:[%s0 + $0xc0] sm:$0xf]
  %v194 = vld [vmem:[%s0 + $0xc4] sm:$0xf]
  %v195 = vld [vmem:[%s0 + $0xc8] sm:$0xf]
  %v196 = vld [vmem:[%s0 + $0xcc] sm:$0xf]
  %v197 = vld [vmem:[%s0 + $0xd0] sm:$0xf]
  %v198 = vld [vmem:[%s0 + $0xd4] sm:$0xf]
  %v199 = vld [vmem:[%s0 + $0xd8] sm:$0xf]
  %v200 = vld [vmem:[%s0 + $0xdc] sm:$0xf]
  %v201 = vld [vmem:[%s0 + $0xe0] sm:$0xf]
  %v202 = vld [vmem:[%s0 + $0xe4] sm:$0xf]
  %v203 = vld [vmem:[%s0 + $0xe8] sm:$0xf]
  %v204 = vld [vmem:[%s0 + $0xec] sm:$0xf]
  %v205 = vld [vmem:[%s0 + $0xf0] sm:$0xf]
  %v206 = vld [vmem:[%s0 + $0xf4] sm:$0xf]
  %v207 = vld [vmem:[%s0 + $0xf8] sm:$0xf]
  %v208 = vld [vmem:[%s0 + $0xfc] sm:$0xf]
  %v209 = vld [vmem:[%s1] sm:$0xf]
  %v210 = vld [vmem:[%s1 + $0x4] sm:$0xf]
  %v211 = vld [vmem:[%s1 + $0x8] sm:$0xf]
  %v212 = vld [vmem:[%s1 + $0xc] sm:$0xf]
  %v213 = vld [vmem:[%s1 + $0x10] sm:$0xf]
  %v214 = vld [vmem:[%s1 + $0x14] sm:$0xf]
  %v215 = vld [vmem:[%s1 + $0x18] sm:$0xf]
  %v216 = vld [vmem:[%s1 + $0x1c] sm:$0xf]
  %v217 = vld [vmem:[%s1 + $0x20] sm:$0xf]
  %v218 = vld [vmem:[%s1 + $0x24] sm:$0xf]
  %v219 = vld [vmem:[%s1 + $0x28] sm:$0xf]
  %v220 = vld [vmem:[%s1 + $0x2c] sm:$0xf]
  %v221 = vld [vmem:[%s1 + $0x30] sm:$0xf]
  %v222 = vld [vmem:[%s1 + $0x34] sm:$0xf]
  %v223 = vld [vmem:[%s1 + $0x38] sm:$0xf]
  %v224 = vld [vmem:[%s1 + $0x3c] sm:$0xf]
  %v289 = vunpack.c.l.b16 %v145
  %v290 = vunpack.c.l.b16 %v146
  %v291 = vunpack.c.l.b16 %v147
  %v292 = vunpack.c.l.b16 %v148
  %v293 = vunpack.c.l.b16 %v149
  %v294 = vunpack.c.l.b16 %v150
  %v295 = vunpack.c.l.b16 %v151
  %v296 = vunpack.c.l.b16 %v152
  %v297 = vunpack.c.l.b16 %v153
  %v298 = vunpack.c.l.b16 %v154
  %v299 = vunpack.c.l.b16 %v155
  %v300 = vunpack.c.l.b16 %v156
  %v301 = vunpack.c.l.b16 %v157
  %v302 = vunpack.c.l.b16 %v158
  %v303 = vunpack.c.l.b16 %v159
  %v304 = vunpack.c.l.b16 %v160
  %v305 = vunpack.c.l.b16 %v161
  %v306 = vunpack.c.l.b16 %v162
  %v307 = vunpack.c.l.b16 %v163
  %v308 = vunpack.c.l.b16 %v164
  %v309 = vunpack.c.l.b16 %v165
  %v310 = vunpack.c.l.b16 %v166
  %v311 = vunpack.c.l.b16 %v167
  %v312 = vunpack.c.l.b16 %v168
  %v313 = vunpack.c.l.b16 %v169
  %v314 = vunpack.c.l.b16 %v170
  %v315 = vunpack.c.l.b16 %v171
  %v316 = vunpack.c.l.b16 %v172
  %v317 = vunpack.c.l.b16 %v173
  %v318 = vunpack.c.l.b16 %v174
  %v319 = vunpack.c.l.b16 %v175
  %v320 = vunpack.c.l.b16 %v176
  %v321 = vunpack.c.l.b16 %v177
  %v322 = vunpack.c.l.b16 %v178
  %v323 = vunpack.c.l.b16 %v179
  %v324 = vunpack.c.l.b16 %v180
  %v325 = vunpack.c.l.b16 %v181
  %v326 = vunpack.c.l.b16 %v182
  %v327 = vunpack.c.l.b16 %v183
  %v328 = vunpack.c.l.b16 %v184
  %v329 = vunpack.c.l.b16 %v185
  %v330 = vunpack.c.l.b16 %v186
  %v331 = vunpack.c.l.b16 %v187
  %v332 = vunpack.c.l.b16 %v188
  %v333 = vunpack.c.l.b16 %v189
  %v334 = vunpack.c.l.b16 %v190
  %v335 = vunpack.c.l.b16 %v191
  %v336 = vunpack.c.l.b16 %v192
  %v337 = vunpack.c.l.b16 %v193
  %v338 = vunpack.c.l.b16 %v194
  %v339 = vunpack.c.l.b16 %v195
  %v340 = vunpack.c.l.b16 %v196
  %v341 = vunpack.c.l.b16 %v197
  %v342 = vunpack.c.l.b16 %v198
  %v343 = vunpack.c.l.b16 %v199
  %v344 = vunpack.c.l.b16 %v200
  %v345 = vunpack.c.l.b16 %v201
  %v346 = vunpack.c.l.b16 %v202
  %v347 = vunpack.c.l.b16 %v203
  %v348 = vunpack.c.l.b16 %v204
  %v349 = vunpack.c.l.b16 %v205
  %v350 = vunpack.c.l.b16 %v206
  %v351 = vunpack.c.l.b16 %v207
  %v352 = vunpack.c.l.b16 %v208
  %v353 = vpack.c.b16 %v290, %v289
  %v354 = vpack.c.b16 %v292, %v291
  %v355 = vpack.c.b16 %v294, %v293
  %v356 = vpack.c.b16 %v296, %v295
  %v357 = vpack.c.b16 %v298, %v297
  %v358 = vpack.c.b16 %v300, %v299
  %v359 = vpack.c.b16 %v302, %v301
  %v360 = vpack.c.b16 %v304, %v303
  %v361 = vpack.c.b16 %v306, %v305
  %v362 = vpack.c.b16 %v308, %v307
  %v363 = vpack.c.b16 %v310, %v309
  %v364 = vpack.c.b16 %v312, %v311
  %v365 = vpack.c.b16 %v314, %v313
  %v366 = vpack.c.b16 %v316, %v315
  %v367 = vpack.c.b16 %v318, %v317
  %v368 = vpack.c.b16 %v320, %v319
  %v369 = vpack.c.b16 %v322, %v321
  %v370 = vpack.c.b16 %v324, %v323
  %v371 = vpack.c.b16 %v326, %v325
  %v372 = vpack.c.b16 %v328, %v327
  %v373 = vpack.c.b16 %v330, %v329
  %v374 = vpack.c.b16 %v332, %v331
  %v375 = vpack.c.b16 %v334, %v333
  %v376 = vpack.c.b16 %v336, %v335
  %v377 = vpack.c.b16 %v338, %v337
  %v378 = vpack.c.b16 %v340, %v339
  %v379 = vpack.c.b16 %v342, %v341
  %v380 = vpack.c.b16 %v344, %v343
  %v381 = vpack.c.b16 %v346, %v345
  %v382 = vpack.c.b16 %v348, %v347
  %v383 = vpack.c.b16 %v350, %v349
  %v384 = vpack.c.b16 %v352, %v351
  %v433 = vunpack.c.l.b16 %v209
  %v434 = vunpack.c.l.b16 %v210
  %v435 = vunpack.c.l.b16 %v211
  %v436 = vunpack.c.l.b16 %v212
  %v437 = vunpack.c.l.b16 %v213
  %v438 = vunpack.c.l.b16 %v214
  %v439 = vunpack.c.l.b16 %v215
  %v440 = vunpack.c.l.b16 %v216
  %v441 = vunpack.c.l.b16 %v217
  %v442 = vunpack.c.l.b16 %v218
  %v443 = vunpack.c.l.b16 %v219
  %v444 = vunpack.c.l.b16 %v220
  %v445 = vunpack.c.l.b16 %v221
  %v446 = vunpack.c.l.b16 %v222
  %v447 = vunpack.c.l.b16 %v223
  %v448 = vunpack.c.l.b16 %v224
  %v449 = vpack.c.b16 %v434, %v433
  %v450 = vpack.c.b16 %v436, %v435
  %v451 = vpack.c.b16 %v438, %v437
  %v452 = vpack.c.b16 %v440, %v439
  %v453 = vpack.c.b16 %v442, %v441
  %v454 = vpack.c.b16 %v444, %v443
  %v455 = vpack.c.b16 %v446, %v445
  %v456 = vpack.c.b16 %v448, %v447
  %465 = vmatpush.bf16.msra.mxu0 %v456
  %466 = vmatpush.bf16.msra.mxu0 %v455
  %467 = vmatpush.bf16.msra.mxu0 %v454
  %468 = vmatpush.bf16.msra.mxu0 %v453
  %469 = vmatpush.bf16.msra.mxu0 %v452
  %470 = vmatpush.bf16.msra.mxu0 %v451
  %471 = vmatpush.bf16.msra.mxu0 %v450
  %472 = vmatpush.bf16.msra.mxu0 %v449
  %473 = vmatmul.bf16.gmra.mxu0 %v353
  %v474 = vpop.f32.mrf.mxu0
  %v475 = vadd.f32 0.0, %v474
  %v476 = vpop.f32.mrf.mxu0
  %v477 = vadd.f32 0.0, %v476
  %478 = vmatmul.bf16.gmra.mxu0 %v354
  %v479 = vpop.f32.mrf.mxu0
  %v480 = vadd.f32 0.0, %v479
  %v481 = vpop.f32.mrf.mxu0
  %v482 = vadd.f32 0.0, %v481
  %483 = vmatmul.bf16.gmra.mxu0 %v355
  %v484 = vpop.f32.mrf.mxu0
  %v485 = vadd.f32 0.0, %v484
  %v486 = vpop.f32.mrf.mxu0
  %v487 = vadd.f32 0.0, %v486
  %488 = vmatmul.bf16.gmra.mxu0 %v356
  %v489 = vpop.f32.mrf.mxu0
  %v490 = vadd.f32 0.0, %v489
  %v491 = vpop.f32.mrf.mxu0
  %v492 = vadd.f32 0.0, %v491
  %493 = vmatmul.bf16.gmra.mxu0 %v357
  %v494 = vpop.f32.mrf.mxu0
  %v495 = vadd.f32 0.0, %v494
  %v496 = vpop.f32.mrf.mxu0
  %v497 = vadd.f32 0.0, %v496
  %498 = vmatmul.bf16.gmra.mxu0 %v358
  %v499 = vpop.f32.mrf.mxu0
  %v500 = vadd.f32 0.0, %v499
  %v501 = vpop.f32.mrf.mxu0
  %v502 = vadd.f32 0.0, %v501
  %503 = vmatmul.bf16.gmra.mxu0 %v359
  %v504 = vpop.f32.mrf.mxu0
  %v505 = vadd.f32 0.0, %v504
  %v506 = vpop.f32.mrf.mxu0
  %v507 = vadd.f32 0.0, %v506
  %508 = vmatmul.bf16.gmra.mxu0 %v360
  %v509 = vpop.f32.mrf.mxu0
  %v510 = vadd.f32 0.0, %v509
  %v511 = vpop.f32.mrf.mxu0
  %v512 = vadd.f32 0.0, %v511
  %513 = vmatmul.bf16.gmra.mxu0 %v361
  %v514 = vpop.f32.mrf.mxu0
  %v515 = vadd.f32 0.0, %v514
  %v516 = vpop.f32.mrf.mxu0
  %v517 = vadd.f32 0.0, %v516
  %518 = vmatmul.bf16.gmra.mxu0 %v362
  %v519 = vpop.f32.mrf.mxu0
  %v520 = vadd.f32 0.0, %v519
  %v521 = vpop.f32.mrf.mxu0
  %v522 = vadd.f32 0.0, %v521
  %523 = vmatmul.bf16.gmra.mxu0 %v363
  %v524 = vpop.f32.mrf.mxu0
  %v525 = vadd.f32 0.0, %v524
  %v526 = vpop.f32.mrf.mxu0
  %v527 = vadd.f32 0.0, %v526
  %528 = vmatmul.bf16.gmra.mxu0 %v364
  %v529 = vpop.f32.mrf.mxu0
  %v530 = vadd.f32 0.0, %v529
  %v531 = vpop.f32.mrf.mxu0
  %v532 = vadd.f32 0.0, %v531
  %533 = vmatmul.bf16.gmra.mxu0 %v365
  %v534 = vpop.f32.mrf.mxu0
  %v535 = vadd.f32 0.0, %v534
  %v536 = vpop.f32.mrf.mxu0
  %v537 = vadd.f32 0.0, %v536
  %538 = vmatmul.bf16.gmra.mxu0 %v366
  %v539 = vpop.f32.mrf.mxu0
  %v540 = vadd.f32 0.0, %v539
  %v541 = vpop.f32.mrf.mxu0
  %v542 = vadd.f32 0.0, %v541
  %543 = vmatmul.bf16.gmra.mxu0 %v367
  %v544 = vpop.f32.mrf.mxu0
  %v545 = vadd.f32 0.0, %v544
  %v546 = vpop.f32.mrf.mxu0
  %v547 = vadd.f32 0.0, %v546
  %548 = vmatmul.bf16.gmra.mxu0 %v368
  %v549 = vpop.f32.mrf.mxu0
  %v550 = vadd.f32 0.0, %v549
  %v551 = vpop.f32.mrf.mxu0
  %v552 = vadd.f32 0.0, %v551
  %553 = vmatmul.bf16.gmra.mxu0 %v369
  %v554 = vpop.f32.mrf.mxu0
  %v555 = vadd.f32 0.0, %v554
  %v556 = vpop.f32.mrf.mxu0
  %v557 = vadd.f32 0.0, %v556
  %558 = vmatmul.bf16.gmra.mxu0 %v370
  %v559 = vpop.f32.mrf.mxu0
  %v560 = vadd.f32 0.0, %v559
  %v561 = vpop.f32.mrf.mxu0
  %v562 = vadd.f32 0.0, %v561
  %563 = vmatmul.bf16.gmra.mxu0 %v371
  %v564 = vpop.f32.mrf.mxu0
  %v565 = vadd.f32 0.0, %v564
  %v566 = vpop.f32.mrf.mxu0
  %v567 = vadd.f32 0.0, %v566
  %568 = vmatmul.bf16.gmra.mxu0 %v372
  %v569 = vpop.f32.mrf.mxu0
  %v570 = vadd.f32 0.0, %v569
  %v571 = vpop.f32.mrf.mxu0
  %v572 = vadd.f32 0.0, %v571
  %573 = vmatmul.bf16.gmra.mxu0 %v373
  %v574 = vpop.f32.mrf.mxu0
  %v575 = vadd.f32 0.0, %v574
  %v576 = vpop.f32.mrf.mxu0
  %v577 = vadd.f32 0.0, %v576
  %578 = vmatmul.bf16.gmra.mxu0 %v374
  %v579 = vpop.f32.mrf.mxu0
  %v580 = vadd.f32 0.0, %v579
  %v581 = vpop.f32.mrf.mxu0
  %v582 = vadd.f32 0.0, %v581
  %583 = vmatmul.bf16.gmra.mxu0 %v375
  %v584 = vpop.f32.mrf.mxu0
  %v585 = vadd.f32 0.0, %v584
  %v586 = vpop.f32.mrf.mxu0
  %v587 = vadd.f32 0.0, %v586
  %588 = vmatmul.bf16.gmra.mxu0 %v376
  %v589 = vpop.f32.mrf.mxu0
  %v590 = vadd.f32 0.0, %v589
  %v591 = vpop.f32.mrf.mxu0
  %v592 = vadd.f32 0.0, %v591
  %593 = vmatmul.bf16.gmra.mxu0 %v377
  %v594 = vpop.f32.mrf.mxu0
  %v595 = vadd.f32 0.0, %v594
  %v596 = vpop.f32.mrf.mxu0
  %v597 = vadd.f32 0.0, %v596
  %598 = vmatmul.bf16.gmra.mxu0 %v378
  %v599 = vpop.f32.mrf.mxu0
  %v600 = vadd.f32 0.0, %v599
  %v601 = vpop.f32.mrf.mxu0
  %v602 = vadd.f32 0.0, %v601
  %603 = vmatmul.bf16.gmra.mxu0 %v379
  %v604 = vpop.f32.mrf.mxu0
  %v605 = vadd.f32 0.0, %v604
  %v606 = vpop.f32.mrf.mxu0
  %v607 = vadd.f32 0.0, %v606
  %608 = vmatmul.bf16.gmra.mxu0 %v380
  %v609 = vpop.f32.mrf.mxu0
  %v610 = vadd.f32 0.0, %v609
  %v611 = vpop.f32.mrf.mxu0
  %v612 = vadd.f32 0.0, %v611
  %613 = vmatmul.bf16.gmra.mxu0 %v381
  %v614 = vpop.f32.mrf.mxu0
  %v615 = vadd.f32 0.0, %v614
  %v616 = vpop.f32.mrf.mxu0
  %v617 = vadd.f32 0.0, %v616
  %618 = vmatmul.bf16.gmra.mxu0 %v382
  %v619 = vpop.f32.mrf.mxu0
  %v620 = vadd.f32 0.0, %v619
  %v621 = vpop.f32.mrf.mxu0
  %v622 = vadd.f32 0.0, %v621
  %623 = vmatmul.bf16.gmra.mxu0 %v383
  %v624 = vpop.f32.mrf.mxu0
  %v625 = vadd.f32 0.0, %v624
  %v626 = vpop.f32.mrf.mxu0
  %v627 = vadd.f32 0.0, %v626
  %628 = vmatmul.bf16.gmra.mxu0 %v384
  %v629 = vpop.f32.mrf.mxu0
  %v630 = vadd.f32 0.0, %v629
  %v631 = vpop.f32.mrf.mxu0
  %v632 = vadd.f32 0.0, %v631
  %633 = vdwg.mxu0
  %v634 = vadd.f32 %v81, %v475
  %v635 = vadd.f32 %v82, %v477
  %v636 = vadd.f32 %v83, %v480
  %v637 = vadd.f32 %v84, %v482
  %v638 = vadd.f32 %v85, %v485
  %v639 = vadd.f32 %v86, %v487
  %v640 = vadd.f32 %v87, %v490
  %v641 = vadd.f32 %v88, %v492
  %v642 = vadd.f32 %v89, %v495
  %v643 = vadd.f32 %v90, %v497
  %v644 = vadd.f32 %v91, %v500
  %v645 = vadd.f32 %v92, %v502
  %v646 = vadd.f32 %v93, %v505
  %v647 = vadd.f32 %v94, %v507
  %v648 = vadd.f32 %v95, %v510
  %v649 = vadd.f32 %v96, %v512
  %v650 = vadd.f32 %v97, %v515
  %v651 = vadd.f32 %v98, %v517
  %v652 = vadd.f32 %v99, %v520
  %v653 = vadd.f32 %v100, %v522
  %v654 = vadd.f32 %v101, %v525
  %v655 = vadd.f32 %v102, %v527
  %v656 = vadd.f32 %v103, %v530
  %v657 = vadd.f32 %v104, %v532
  %v658 = vadd.f32 %v105, %v535
  %v659 = vadd.f32 %v106, %v537
  %v660 = vadd.f32 %v107, %v540
  %v661 = vadd.f32 %v108, %v542
  %v662 = vadd.f32 %v109, %v545
  %v663 = vadd.f32 %v110, %v547
  %v664 = vadd.f32 %v111, %v550
  %v665 = vadd.f32 %v112, %v552
  %v666 = vadd.f32 %v113, %v555
  %v667 = vadd.f32 %v114, %v557
  %v668 = vadd.f32 %v115, %v560
  %v669 = vadd.f32 %v116, %v562
  %v670 = vadd.f32 %v117, %v565
  %v671 = vadd.f32 %v118, %v567
  %v672 = vadd.f32 %v119, %v570
  %v673 = vadd.f32 %v120, %v572
  %v674 = vadd.f32 %v121, %v575
  %v675 = vadd.f32 %v122, %v577
  %v676 = vadd.f32 %v123, %v580
  %v677 = vadd.f32 %v124, %v582
  %v678 = vadd.f32 %v125, %v585
  %v679 = vadd.f32 %v126, %v587
  %v680 = vadd.f32 %v127, %v590
  %v681 = vadd.f32 %v128, %v592
  %v682 = vadd.f32 %v129, %v595
  %v683 = vadd.f32 %v130, %v597
  %v684 = vadd.f32 %v131, %v600
  %v685 = vadd.f32 %v132, %v602
  %v686 = vadd.f32 %v133, %v605
  %v687 = vadd.f32 %v134, %v607
  %v688 = vadd.f32 %v135, %v610
  %v689 = vadd.f32 %v136, %v612
  %v690 = vadd.f32 %v137, %v615
  %v691 = vadd.f32 %v138, %v617
  %v692 = vadd.f32 %v139, %v620
  %v693 = vadd.f32 %v140, %v622
  %v694 = vadd.f32 %v141, %v625
  %v695 = vadd.f32 %v142, %v627
  %v696 = vadd.f32 %v143, %v630
  %v697 = vadd.f32 %v144, %v632
  %698 = vst [vmem:[#allocation2] sm:$0xff] %v634
  %699 = vst [vmem:[#allocation2 + $0x8] sm:$0xff] %v635
  %700 = vst [vmem:[#allocation2 + $0x10] sm:$0xff] %v636
  %701 = vst [vmem:[#allocation2 + $0x18] sm:$0xff] %v637
  %702 = vst [vmem:[#allocation2 + $0x20] sm:$0xff] %v638
  %703 = vst [vmem:[#allocation2 + $0x28] sm:$0xff] %v639
  %704 = vst [vmem:[#allocation2 + $0x30] sm:$0xff] %v640
  %705 = vst [vmem:[#allocation2 + $0x38] sm:$0xff] %v641
  %706 = vst [vmem:[#allocation2 + $0x40] sm:$0xff] %v642
  %707 = vst [vmem:[#allocation2 + $0x48] sm:$0xff] %v643
  %708 = vst [vmem:[#allocation2 + $0x50] sm:$0xff] %v644
  %709 = vst [vmem:[#allocation2 + $0x58] sm:$0xff] %v645
  %710 = vst [vmem:[#allocation2 + $0x60] sm:$0xff] %v646
  %711 = vst [vmem:[#allocation2 + $0x68] sm:$0xff] %v647
  %712 = vst [vmem:[#allocation2 + $0x70] sm:$0xff] %v648
  %713 = vst [vmem:[#allocation2 + $0x78] sm:$0xff] %v649
  %714 = vst [vmem:[#allocation2 + $0x80] sm:$0xff] %v650
  %715 = vst [vmem:[#allocation2 + $0x88] sm:$0xff] %v651
  %716 = vst [vmem:[#allocation2 + $0x90] sm:$0xff] %v652
  %717 = vst [vmem:[#allocation2 + $0x98] sm:$0xff] %v653
  %718 = vst [vmem:[#allocation2 + $0xa0] sm:$0xff] %v654
  %719 = vst [vmem:[#allocation2 + $0xa8] sm:$0xff] %v655
  %720 = vst [vmem:[#allocation2 + $0xb0] sm:$0xff] %v656
  %721 = vst [vmem:[#allocation2 + $0xb8] sm:$0xff] %v657
  %722 = vst [vmem:[#allocation2 + $0xc0] sm:$0xff] %v658
  %723 = vst [vmem:[#allocation2 + $0xc8] sm:$0xff] %v659
  %724 = vst [vmem:[#allocation2 + $0xd0] sm:$0xff] %v660
  %725 = vst [vmem:[#allocation2 + $0xd8] sm:$0xff] %v661
  %726 = vst [vmem:[#allocation2 + $0xe0] sm:$0xff] %v662
  %727 = vst [vmem:[#allocation2 + $0xe8] sm:$0xff] %v663
  %728 = vst [vmem:[#allocation2 + $0xf0] sm:$0xff] %v664
  %729 = vst [vmem:[#allocation2 + $0xf8] sm:$0xff] %v665
  %730 = vst [vmem:[#allocation2 + $0x100] sm:$0xff] %v666
  %731 = vst [vmem:[#allocation2 + $0x108] sm:$0xff] %v667
  %732 = vst [vmem:[#allocation2 + $0x110] sm:$0xff] %v668
  %733 = vst [vmem:[#allocation2 + $0x118] sm:$0xff] %v669
  %734 = vst [vmem:[#allocation2 + $0x120] sm:$0xff] %v670
  %735 = vst [vmem:[#allocation2 + $0x128] sm:$0xff] %v671
  %736 = vst [vmem:[#allocation2 + $0x130] sm:$0xff] %v672
  %737 = vst [vmem:[#allocation2 + $0x138] sm:$0xff] %v673
  %738 = vst [vmem:[#allocation2 + $0x140] sm:$0xff] %v674
  %739 = vst [vmem:[#allocation2 + $0x148] sm:$0xff] %v675
  %740 = vst [vmem:[#allocation2 + $0x150] sm:$0xff] %v676
  %741 = vst [vmem:[#allocation2 + $0x158] sm:$0xff] %v677
  %742 = vst [vmem:[#allocation2 + $0x160] sm:$0xff] %v678
  %743 = vst [vmem:[#allocation2 + $0x168] sm:$0xff] %v679
  %744 = vst [vmem:[#allocation2 + $0x170] sm:$0xff] %v680
  %745 = vst [vmem:[#allocation2 + $0x178] sm:$0xff] %v681
  %746 = vst [vmem:[#allocation2 + $0x180] sm:$0xff] %v682
  %747 = vst [vmem:[#allocation2 + $0x188] sm:$0xff] %v683
  %748 = vst [vmem:[#allocation2 + $0x190] sm:$0xff] %v684
  %749 = vst [vmem:[#allocation2 + $0x198] sm:$0xff] %v685
  %750 = vst [vmem:[#allocation2 + $0x1a0] sm:$0xff] %v686
  %751 = vst [vmem:[#allocation2 + $0x1a8] sm:$0xff] %v687
  %752 = vst [vmem:[#allocation2 + $0x1b0] sm:$0xff] %v688
  %753 = vst [vmem:[#allocation2 + $0x1b8] sm:$0xff] %v689
  %754 = vst [vmem:[#allocation2 + $0x1c0] sm:$0xff] %v690
  %755 = vst [vmem:[#allocation2 + $0x1c8] sm:$0xff] %v691
  %756 = vst [vmem:[#allocation2 + $0x1d0] sm:$0xff] %v692
  %757 = vst [vmem:[#allocation2 + $0x1d8] sm:$0xff] %v693
  %758 = vst [vmem:[#allocation2 + $0x1e0] sm:$0xff] %v694
  %759 = vst [vmem:[#allocation2 + $0x1e8] sm:$0xff] %v695
  %760 = vst [vmem:[#allocation2 + $0x1f0] sm:$0xff] %v696
  %761 = vst [vmem:[#allocation2 + $0x1f8] sm:$0xff] %v697
  // Predicated region
  $region14: #{conv_module_forward.2} parent=0 // pred_check
    %p762 = pneg %p13
  $region15: #{conv_module_forward.2} parent=0 // pred_check_branch
    %764 = sbr.rel (%p762) target = $region17
  $region16: #{conv_module_forward.2} parent=0 // pred_region
    %v765 = vld [vmem:[#allocation2] sm:$0xff]
    %v766 = vld [vmem:[#allocation2 + $0x8] sm:$0xff]
    %v767 = vld [vmem:[#allocation2 + $0x10] sm:$0xff]
    %v768 = vld [vmem:[#allocation2 + $0x18] sm:$0xff]
    %v769 = vld [vmem:[#allocation2 + $0x20] sm:$0xff]
    %v770 = vld [vmem:[#allocation2 + $0x28] sm:$0xff]
    %v771 = vld [vmem:[#allocation2 + $0x30] sm:$0xff]
    %v772 = vld [vmem:[#allocation2 + $0x38] sm:$0xff]
    %v773 = vld [vmem:[#allocation2 + $0x40] sm:$0xff]
    %v774 = vld [vmem:[#allocation2 + $0x48] sm:$0xff]
    %v775 = vld [vmem:[#allocation2 + $0x50] sm:$0xff]
    %v776 = vld [vmem:[#allocation2 + $0x58] sm:$0xff]
    %v777 = vld [vmem:[#allocation2 + $0x60] sm:$0xff]
    %v778 = vld [vmem:[#allocation2 + $0x68] sm:$0xff]
    %v779 = vld [vmem:[#allocation2 + $0x70] sm:$0xff]
    %v780 = vld [vmem:[#allocation2 + $0x78] sm:$0xff]
    %v781 = vld [vmem:[#allocation2 + $0x80] sm:$0xff]
    %v782 = vld [vmem:[#allocation2 + $0x88] sm:$0xff]
    %v783 = vld [vmem:[#allocation2 + $0x90] sm:$0xff]
    %v784 = vld [vmem:[#allocation2 + $0x98] sm:$0xff]
    %v785 = vld [vmem:[#allocation2 + $0xa0] sm:$0xff]
    %v786 = vld [vmem:[#allocation2 + $0xa8] sm:$0xff]
    %v787 = vld [vmem:[#allocation2 + $0xb0] sm:$0xff]
    %v788 = vld [vmem:[#allocation2 + $0xb8] sm:$0xff]
    %v789 = vld [vmem:[#allocation2 + $0xc0] sm:$0xff]
    %v790 = vld [vmem:[#allocation2 + $0xc8] sm:$0xff]
    %v791 = vld [vmem:[#allocation2 + $0xd0] sm:$0xff]
    %v792 = vld [vmem:[#allocation2 + $0xd8] sm:$0xff]
    %v793 = vld [vmem:[#allocation2 + $0xe0] sm:$0xff]
    %v794 = vld [vmem:[#allocation2 + $0xe8] sm:$0xff]
    %v795 = vld [vmem:[#allocation2 + $0xf0] sm:$0xff]
    %v796 = vld [vmem:[#allocation2 + $0xf8] sm:$0xff]
    %v797 = vld [vmem:[#allocation2 + $0x100] sm:$0xff]
    %v798 = vld [vmem:[#allocation2 + $0x108] sm:$0xff]
    %v799 = vld [vmem:[#allocation2 + $0x110] sm:$0xff]
    %v800 = vld [vmem:[#allocation2 + $0x118] sm:$0xff]
    %v801 = vld [vmem:[#allocation2 + $0x120] sm:$0xff]
    %v802 = vld [vmem:[#allocation2 + $0x128] sm:$0xff]
    %v803 = vld [vmem:[#allocation2 + $0x130] sm:$0xff]
    %v804 = vld [vmem:[#allocation2 + $0x138] sm:$0xff]
    %v805 = vld [vmem:[#allocation2 + $0x140] sm:$0xff]
    %v806 = vld [vmem:[#allocation2 + $0x148] sm:$0xff]
    %v807 = vld [vmem:[#allocation2 + $0x150] sm:$0xff]
    %v808 = vld [vmem:[#allocation2 + $0x158] sm:$0xff]
    %v809 = vld [vmem:[#allocation2 + $0x160] sm:$0xff]
    %v810 = vld [vmem:[#allocation2 + $0x168] sm:$0xff]
    %v811 = vld [vmem:[#allocation2 + $0x170] sm:$0xff]
    %v812 = vld [vmem:[#allocation2 + $0x178] sm:$0xff]
    %v813 = vld [vmem:[#allocation2 + $0x180] sm:$0xff]
    %v814 = vld [vmem:[#allocation2 + $0x188] sm:$0xff]
    %v815 = vld [vmem:[#allocation2 + $0x190] sm:$0xff]
    %v816 = vld [vmem:[#allocation2 + $0x198] sm:$0xff]
    %v817 = vld [vmem:[#allocation2 + $0x1a0] sm:$0xff]
    %v818 = vld [vmem:[#allocation2 + $0x1a8] sm:$0xff]
    %v819 = vld [vmem:[#allocation2 + $0x1b0] sm:$0xff]
    %v820 = vld [vmem:[#allocation2 + $0x1b8] sm:$0xff]
    %v821 = vld [vmem:[#allocation2 + $0x1c0] sm:$0xff]
    %v822 = vld [vmem:[#allocation2 + $0x1c8] sm:$0xff]
    %v823 = vld [vmem:[#allocation2 + $0x1d0] sm:$0xff]
    %v824 = vld [vmem:[#allocation2 + $0x1d8] sm:$0xff]
    %v825 = vld [vmem:[#allocation2 + $0x1e0] sm:$0xff]
    %v826 = vld [vmem:[#allocation2 + $0x1e8] sm:$0xff]
    %v827 = vld [vmem:[#allocation2 + $0x1f0] sm:$0xff]
    %v828 = vld [vmem:[#allocation2 + $0x1f8] sm:$0xff]
    %829 = vst [vmem:[%s2] sm:$0xff] %v765
    %830 = vst [vmem:[%s2 + $0x8] sm:$0xff] %v766
    %831 = vst [vmem:[%s2 + $0x10] sm:$0xff] %v767
    %832 = vst [vmem:[%s2 + $0x18] sm:$0xff] %v768
    %833 = vst [vmem:[%s2 + $0x20] sm:$0xff] %v769
    %834 = vst [vmem:[%s2 + $0x28] sm:$0xff] %v770
    %835 = vst [vmem:[%s2 + $0x30] sm:$0xff] %v771
    %836 = vst [vmem:[%s2 + $0x38] sm:$0xff] %v772
    %837 = vst [vmem:[%s2 + $0x40] sm:$0xff] %v773
    %838 = vst [vmem:[%s2 + $0x48] sm:$0xff] %v774
    %839 = vst [vmem:[%s2 + $0x50] sm:$0xff] %v775
    %840 = vst [vmem:[%s2 + $0x58] sm:$0xff] %v776
    %841 = vst [vmem:[%s2 + $0x60] sm:$0xff] %v777
    %842 = vst [vmem:[%s2 + $0x68] sm:$0xff] %v778
    %843 = vst [vmem:[%s2 + $0x70] sm:$0xff] %v779
    %844 = vst [vmem:[%s2 + $0x78] sm:$0xff] %v780
    %845 = vst [vmem:[%s2 + $0x80] sm:$0xff] %v781
    %846 = vst [vmem:[%s2 + $0x88] sm:$0xff] %v782
    %847 = vst [vmem:[%s2 + $0x90] sm:$0xff] %v783
    %848 = vst [vmem:[%s2 + $0x98] sm:$0xff] %v784
    %849 = vst [vmem:[%s2 + $0xa0] sm:$0xff] %v785
    %850 = vst [vmem:[%s2 + $0xa8] sm:$0xff] %v786
    %851 = vst [vmem:[%s2 + $0xb0] sm:$0xff] %v787
    %852 = vst [vmem:[%s2 + $0xb8] sm:$0xff] %v788
    %853 = vst [vmem:[%s2 + $0xc0] sm:$0xff] %v789
    %854 = vst [vmem:[%s2 + $0xc8] sm:$0xff] %v790
    %855 = vst [vmem:[%s2 + $0xd0] sm:$0xff] %v791
    %856 = vst [vmem:[%s2 + $0xd8] sm:$0xff] %v792
    %857 = vst [vmem:[%s2 + $0xe0] sm:$0xff] %v793
    %858 = vst [vmem:[%s2 + $0xe8] sm:$0xff] %v794
    %859 = vst [vmem:[%s2 + $0xf0] sm:$0xff] %v795
    %860 = vst [vmem:[%s2 + $0xf8] sm:$0xff] %v796
    %861 = vst [vmem:[%s2 + $0x100] sm:$0xff] %v797
    %862 = vst [vmem:[%s2 + $0x108] sm:$0xff] %v798
    %863 = vst [vmem:[%s2 + $0x110] sm:$0xff] %v799
    %864 = vst [vmem:[%s2 + $0x118] sm:$0xff] %v800
    %865 = vst [vmem:[%s2 + $0x120] sm:$0xff] %v801
    %866 = vst [vmem:[%s2 + $0x128] sm:$0xff] %v802
    %867 = vst [vmem:[%s2 + $0x130] sm:$0xff] %v803
    %868 = vst [vmem:[%s2 + $0x138] sm:$0xff] %v804
    %869 = vst [vmem:[%s2 + $0x140] sm:$0xff] %v805
    %870 = vst [vmem:[%s2 + $0x148] sm:$0xff] %v806
    %871 = vst [vmem:[%s2 + $0x150] sm:$0xff] %v807
    %872 = vst [vmem:[%s2 + $0x158] sm:$0xff] %v808
    %873 = vst [vmem:[%s2 + $0x160] sm:$0xff] %v809
    %874 = vst [vmem:[%s2 + $0x168] sm:$0xff] %v810
    %875 = vst [vmem:[%s2 + $0x170] sm:$0xff] %v811
    %876 = vst [vmem:[%s2 + $0x178] sm:$0xff] %v812
    %877 = vst [vmem:[%s2 + $0x180] sm:$0xff] %v813
    %878 = vst [vmem:[%s2 + $0x188] sm:$0xff] %v814
    %879 = vst [vmem:[%s2 + $0x190] sm:$0xff] %v815
    %880 = vst [vmem:[%s2 + $0x198] sm:$0xff] %v816
    %881 = vst [vmem:[%s2 + $0x1a0] sm:$0xff] %v817
    %882 = vst [vmem:[%s2 + $0x1a8] sm:$0xff] %v818
    %883 = vst [vmem:[%s2 + $0x1b0] sm:$0xff] %v819
    %884 = vst [vmem:[%s2 + $0x1b8] sm:$0xff] %v820
    %885 = vst [vmem:[%s2 + $0x1c0] sm:$0xff] %v821
    %886 = vst [vmem:[%s2 + $0x1c8] sm:$0xff] %v822
    %887 = vst [vmem:[%s2 + $0x1d0] sm:$0xff] %v823
    %888 = vst [vmem:[%s2 + $0x1d8] sm:$0xff] %v824
    %889 = vst [vmem:[%s2 + $0x1e0] sm:$0xff] %v825
    %890 = vst [vmem:[%s2 + $0x1e8] sm:$0xff] %v826
    %891 = vst [vmem:[%s2 + $0x1f0] sm:$0xff] %v827
    %892 = vst [vmem:[%s2 + $0x1f8] sm:$0xff] %v828
    %v893 = vadd.f32 %v765, %v766
    %v894 = vadd.f32 %v893, %v767
    %v895 = vadd.f32 %v894, %v768
    %v896 = vadd.f32 %v895, %v769
    %v897 = vadd.f32 %v896, %v770
    %v898 = vadd.f32 %v897, %v771
    %v899 = vadd.f32 %v898, %v772
    %v900 = vadd.f32 %v899, %v773
    %v901 = vadd.f32 %v900, %v774
    %v902 = vadd.f32 %v901, %v775
    %v903 = vadd.f32 %v902, %v776
    %v904 = vadd.f32 %v903, %v777
    %v905 = vadd.f32 %v904, %v778
    %v906 = vadd.f32 %v905, %v779
    %v907 = vadd.f32 %v906, %v780
    %v908 = vadd.f32 %v907, %v781
    %v909 = vadd.f32 %v908, %v782
    %v910 = vadd.f32 %v909, %v783
    %v911 = vadd.f32 %v910, %v784
    %v912 = vadd.f32 %v911, %v785
    %v913 = vadd.f32 %v912, %v786
    %v914 = vadd.f32 %v913, %v787
    %v915 = vadd.f32 %v914, %v788
    %v916 = vadd.f32 %v915, %v789
    %v917 = vadd.f32 %v916, %v790
    %v918 = vadd.f32 %v917, %v791
    %v919 = vadd.f32 %v918, %v792
    %v920 = vadd.f32 %v919, %v793
    %v921 = vadd.f32 %v920, %v794
    %v922 = vadd.f32 %v921, %v795
    %v923 = vadd.f32 %v922, %v796
    %v924 = vadd.f32 %v923, %v797
    %v925 = vadd.f32 %v924, %v798
    %v926 = vadd.f32 %v925, %v799
    %v927 = vadd.f32 %v926, %v800
    %v928 = vadd.f32 %v927, %v801
    %v929 = vadd.f32 %v928, %v802
    %v930 = vadd.f32 %v929, %v803
    %v931 = vadd.f32 %v930, %v804
    %v932 = vadd.f32 %v931, %v805
    %v933 = vadd.f32 %v932, %v806
    %v934 = vadd.f32 %v933, %v807
    %v935 = vadd.f32 %v934, %v808
    %v936 = vadd.f32 %v935, %v809
    %v937 = vadd.f32 %v936, %v810
    %v938 = vadd.f32 %v937, %v811
    %v939 = vadd.f32 %v938, %v812
    %v940 = vadd.f32 %v939, %v813
    %v941 = vadd.f32 %v940, %v814
    %v942 = vadd.f32 %v941, %v815
    %v943 = vadd.f32 %v942, %v816
    %v944 = vadd.f32 %v943, %v817
    %v945 = vadd.f32 %v944, %v818
    %v946 = vadd.f32 %v945, %v819
    %v947 = vadd.f32 %v946, %v820
    %v948 = vadd.f32 %v947, %v821
    %v949 = vadd.f32 %v948, %v822
    %v950 = vadd.f32 %v949, %v823
    %v951 = vadd.f32 %v950, %v824
    %v952 = vadd.f32 %v951, %v825
    %v953 = vadd.f32 %v952, %v826
    %v954 = vadd.f32 %v953, %v827
    %v955 = vadd.f32 %v954, %v828
    %v956 = vrot.slane %v955, 4
    %v957 = vadd.f32 %v955, %v956
    %v958 = vrot.slane %v957, 2
    %v959 = vadd.f32 %v957, %v958
    %v960 = vrot.slane %v959, 1
    %v961 = vadd.f32 %v959, %v960
    %v962 = vmul.f32 %v765, %v765
    %v963 = vmul.f32 %v766, %v766
    %v964 = vmul.f32 %v767, %v767
    %v965 = vmul.f32 %v768, %v768
    %v966 = vmul.f32 %v769, %v769
    %v967 = vmul.f32 %v770, %v770
    %v968 = vmul.f32 %v771, %v771
    %v969 = vmul.f32 %v772, %v772
    %v970 = vmul.f32 %v773, %v773
    %v971 = vmul.f32 %v774, %v774
    %v972 = vmul.f32 %v775, %v775
    %v973 = vmul.f32 %v776, %v776
    %v974 = vmul.f32 %v777, %v777
    %v975 = vmul.f32 %v778, %v778
    %v976 = vmul.f32 %v779, %v779
    %v977 = vmul.f32 %v780, %v780
    %v978 = vmul.f32 %v781, %v781
    %v979 = vmul.f32 %v782, %v782
    %v980 = vmul.f32 %v783, %v783
    %v981 = vmul.f32 %v784, %v784
    %v982 = vmul.f32 %v785, %v785
    %v983 = vmul.f32 %v786, %v786
    %v984 = vmul.f32 %v787, %v787
    %v985 = vmul.f32 %v788, %v788
    %v986 = vmul.f32 %v789, %v789
    %v987 = vmul.f32 %v790, %v790
    %v988 = vmul.f32 %v791, %v791
    %v989 = vmul.f32 %v792, %v792
    %v990 = vmul.f32 %v793, %v793
    %v991 = vmul.f32 %v794, %v794
    %v992 = vmul.f32 %v795, %v795
    %v993 = vmul.f32 %v796, %v796
    %v994 = vmul.f32 %v797, %v797
    %v995 = vmul.f32 %v798, %v798
    %v996 = vmul.f32 %v799, %v799
    %v997 = vmul.f32 %v800, %v800
    %v998 = vmul.f32 %v801, %v801
    %v999 = vmul.f32 %v802, %v802
    %v1000 = vmul.f32 %v803, %v803
    %v1001 = vmul.f32 %v804, %v804
    %v1002 = vmul.f32 %v805, %v805
    %v1003 = vmul.f32 %v806, %v806
    %v1004 = vmul.f32 %v807, %v807
    %v1005 = vmul.f32 %v808, %v808
    %v1006 = vmul.f32 %v809, %v809
    %v1007 = vmul.f32 %v810, %v810
    %v1008 = vmul.f32 %v811, %v811
    %v1009 = vmul.f32 %v812, %v812
    %v1010 = vmul.f32 %v813, %v813
    %v1011 = vmul.f32 %v814, %v814
    %v1012 = vmul.f32 %v815, %v815
    %v1013 = vmul.f32 %v816, %v816
    %v1014 = vmul.f32 %v817, %v817
    %v1015 = vmul.f32 %v818, %v818
    %v1016 = vmul.f32 %v819, %v819
    %v1017 = vmul.f32 %v820, %v820
    %v1018 = vmul.f32 %v821, %v821
    %v1019 = vmul.f32 %v822, %v822
    %v1020 = vmul.f32 %v823, %v823
    %v1021 = vmul.f32 %v824, %v824
    %v1022 = vmul.f32 %v825, %v825
    %v1023 = vmul.f32 %v826, %v826
    %v1024 = vmul.f32 %v827, %v827
    %v1025 = vmul.f32 %v828, %v828
    %v1026 = vadd.f32 %v962, %v963
    %v1027 = vadd.f32 %v1026, %v964
    %v1028 = vadd.f32 %v1027, %v965
    %v1029 = vadd.f32 %v1028, %v966
    %v1030 = vadd.f32 %v1029, %v967
    %v1031 = vadd.f32 %v1030, %v968
    %v1032 = vadd.f32 %v1031, %v969
    %v1033 = vadd.f32 %v1032, %v970
    %v1034 = vadd.f32 %v1033, %v971
    %v1035 = vadd.f32 %v1034, %v972
    %v1036 = vadd.f32 %v1035, %v973
    %v1037 = vadd.f32 %v1036, %v974
    %v1038 = vadd.f32 %v1037, %v975
    %v1039 = vadd.f32 %v1038, %v976
    %v1040 = vadd.f32 %v1039, %v977
    %v1041 = vadd.f32 %v1040, %v978
    %v1042 = vadd.f32 %v1041, %v979
    %v1043 = vadd.f32 %v1042, %v980
    %v1044 = vadd.f32 %v1043, %v981
    %v1045 = vadd.f32 %v1044, %v982
    %v1046 = vadd.f32 %v1045, %v983
    %v1047 = vadd.f32 %v1046, %v984
    %v1048 = vadd.f32 %v1047, %v985
    %v1049 = vadd.f32 %v1048, %v986
    %v1050 = vadd.f32 %v1049, %v987
    %v1051 = vadd.f32 %v1050, %v988
    %v1052 = vadd.f32 %v1051, %v989
    %v1053 = vadd.f32 %v1052, %v990
    %v1054 = vadd.f32 %v1053, %v991
    %v1055 = vadd.f32 %v1054, %v992
    %v1056 = vadd.f32 %v1055, %v993
    %v1057 = vadd.f32 %v1056, %v994
    %v1058 = vadd.f32 %v1057, %v995
    %v1059 = vadd.f32 %v1058, %v996
    %v1060 = vadd.f32 %v1059, %v997
    %v1061 = vadd.f32 %v1060, %v998
    %v1062 = vadd.f32 %v1061, %v999
    %v1063 = vadd.f32 %v1062, %v1000
    %v1064 = vadd.f32 %v1063, %v1001
    %v1065 = vadd.f32 %v1064, %v1002
    %v1066 = vadd.f32 %v1065, %v1003
    %v1067 = vadd.f32 %v1066, %v1004
    %v1068 = vadd.f32 %v1067, %v1005
    %v1069 = vadd.f32 %v1068, %v1006
    %v1070 = vadd.f32 %v1069, %v1007
    %v1071 = vadd.f32 %v1070, %v1008
    %v1072 = vadd.f32 %v1071, %v1009
    %v1073 = vadd.f32 %v1072, %v1010
    %v1074 = vadd.f32 %v1073, %v1011
    %v1075 = vadd.f32 %v1074, %v1012
    %v1076 = vadd.f32 %v1075, %v1013
    %v1077 = vadd.f32 %v1076, %v1014
    %v1078 = vadd.f32 %v1077, %v1015
    %v1079 = vadd.f32 %v1078, %v1016
    %v1080 = vadd.f32 %v1079, %v1017
    %v1081 = vadd.f32 %v1080, %v1018
    %v1082 = vadd.f32 %v1081, %v1019
    %v1083 = vadd.f32 %v1082, %v1020
    %v1084 = vadd.f32 %v1083, %v1021
    %v1085 = vadd.f32 %v1084, %v1022
    %v1086 = vadd.f32 %v1085, %v1023
    %v1087 = vadd.f32 %v1086, %v1024
    %v1088 = vadd.f32 %v1087, %v1025
    %v1089 = vrot.slane %v1088, 4
    %v1090 = vadd.f32 %v1088, %v1089
    %v1091 = vrot.slane %v1090, 2
    %v1092 = vadd.f32 %v1090, %v1091
    %v1093 = vrot.slane %v1092, 1
    %v1094 = vadd.f32 %v1092, %v1093
    %v1095 = vlaneseq
    %v1096 = vshrl.u32 %v1095, 7
    %vm1097 = vcmp.eq.s32.totalorder %v1096, 0
    %vm1098 = vcmp.eq.s32.totalorder %v1096, 1
    %v1099 = vsel %vm1098, %v1094, 0.0
    %v1100 = vsel %vm1097, %v961, %v1099
    %1101 = vst [vmem:[%s3] sm:$0xff] %v1100
  $region17: #{conv_module_forward.2} parent=0 // pred_fallthru
    _
  // Predicated region
  $region18: #{conv_module_forward.2} parent=0 // pred_check
    _
  $region19: #{conv_module_forward.2} parent=0 // pred_check_branch
    %1103 = sbr.rel (0) target = $region21
  $region20: #{conv_module_forward.2} parent=0 // pred_region
    _
  $region21: #{conv_module_forward.2} parent=0 // pred_fallthru
    _
  // Predicated region
  $region22: #{conv_module_forward.2} parent=0 // pred_check
    _
  $region23: #{conv_module_forward.2} parent=0 // pred_check_branch
    %1105 = sbr.rel (0) target = $region25
  $region24: #{conv_module_forward.2} parent=0 // pred_region
    _
  $region25: #{conv_module_forward.2} parent=0 // pred_fallthru
    _
  // Predicated region
  $region26: #{conv_module_forward.2} parent=0 // pred_check
    _
  $region27: #{conv_module_forward.2} parent=0 // pred_check_branch
    %1107 = sbr.rel (0) target = $region29
  $region28: #{conv_module_forward.2} parent=0 // pred_region
    _
  $region29: #{conv_module_forward.2} parent=0 // pred_fallthru
    _
  // Predicated region
  $region30: #{conv_module_forward.2} parent=0 // pred_check
    _
  $region31: #{conv_module_forward.2} parent=0 // pred_check_branch
    %1109 = sbr.rel (0) target = $region33
  $region32: #{conv_module_forward.2} parent=0 // pred_region
    _
  $region33: #{conv_module_forward.2} parent=0 // pred_fallthru
    _

</llo_original>
